<compile_context>
chip_gen: v5e
topology: v5e:2x2
jax: 0.10.0
libtpu: 0.0.40
codegen_flags: <defaults>
</compile_context>

<pallas_src>
import math
import functools

import jax
import jax.numpy as jnp
import numpy as np
from jax.experimental import pallas as pl
from jax.experimental.pallas import tpu as pltpu


# ----------------------------- activations (ACT2FN) -------------------------
def gelu(x):
    # exact (erf-based) gelu, as in the reference module
    return x * 0.5 * (1.0 + jax.lax.erf(x / math.sqrt(2.0)))


def swish(x):
    return x * jax.nn.sigmoid(x)


ACT2FN = {"gelu": gelu, "relu": lambda x: jnp.maximum(x, 0.0), "swish": swish}


def _tf_layer_norm(x, w, b, eps=1e-12):
    """LayerNorm exactly as the PyTorch module: biased variance, eps inside sqrt."""
    u = jnp.mean(x, axis=-1, keepdims=True)
    s = jnp.mean((x - u) ** 2, axis=-1, keepdims=True)
    return w * ((x - u) / jnp.sqrt(s + eps)) + b


# ----------------------------- fused encoder kernel --------------------------
def sasrec_encoder_kernel(
    x_ref, mask_ref,
    wq_ref, bq_ref, wk_ref, bk_ref, wv_ref, bv_ref,
    wo_ref, bo_ref, ln1w_ref, ln1b_ref,
    w1_ref, b1_ref, w2_ref, b2_ref, ln2w_ref, ln2b_ref,
    out_ref, ctx_ref,
    *, num_layers, num_heads, act_name,
):
    """All transformer layers for one block of `bt` batch rows.

    x_ref:  (bt, S, H) f32 activations
    mask:   (S, S)     f32 additive mask (shared across batch / heads), VMEM-resident
    weights: stacked per-layer (leading dim = num_layers); matmul weights are bf16
    out_ref: (num_layers, bt, S, H) — per-layer encoder outputs
    ctx_ref: (bt, S, H) f32 VMEM scratch, reused for every layer / head
    """
    act_fn = ACT2FN[act_name]
    bt, S, H = x_ref.shape
    dh = H // num_heads
    scale = 1.0 / math.sqrt(dh)
    cdt = wq_ref.dtype  # matmul compute dtype (bf16)

    mask = mask_ref[...]                       # (S, S) f32
    h_cur = x_ref[...].reshape(bt * S, H)      # (bt*S, H) f32

    for l in range(num_layers):                # layers unrolled; weights stay resident
        # ---- SelfAttention: fused Q/K/V projections over all rows (MXU, bf16) ----
        xb = h_cur.astype(cdt)
        q = jnp.dot(xb, wq_ref[l], preferred_element_type=jnp.float32) + bq_ref[l]
        k = jnp.dot(xb, wk_ref[l], preferred_element_type=jnp.float32) + bk_ref[l]
        v = jnp.dot(xb, wv_ref[l], preferred_element_type=jnp.float32) + bv_ref[l]
        q3 = q.astype(cdt).reshape(bt, S, H)
        k3 = k.astype(cdt).reshape(bt, S, H)
        v3 = v.astype(cdt).reshape(bt, S, H)

        # ---- per-head attention, batched over the bt rows; write into scratch ----
        for h in range(num_heads):
            lo, hi = h * dh, (h + 1) * dh
            s = jnp.einsum("bqd,bkd->bqk", q3[:, :, lo:hi], k3[:, :, lo:hi],
                           preferred_element_type=jnp.float32)
            s = s * scale + mask[None]                        # additive mask
            s = s - jnp.max(s, axis=-1, keepdims=True)        # stable softmax (f32)
            p = jnp.exp(s)
            p = p * pl.reciprocal(jnp.sum(p, axis=-1, keepdims=True), approx=True)
            ctx_ref[:, :, lo:hi] = jnp.einsum(
                "bqk,bkd->bqd", p.astype(cdt), v3[:, :, lo:hi],
                preferred_element_type=jnp.float32)

        # ---- attention output dense + residual + LayerNorm (f32) ----
        ctx = ctx_ref[...].reshape(bt * S, H).astype(cdt)
        attn = jnp.dot(ctx, wo_ref[l], preferred_element_type=jnp.float32) + bo_ref[l]
        h1 = _tf_layer_norm(attn + h_cur, ln1w_ref[l], ln1b_ref[l])

        # ---- Intermediate (FFN): H -> 4H -> H, act, residual, LayerNorm ----
        ff = jnp.dot(h1.astype(cdt), w1_ref[l], preferred_element_type=jnp.float32) + b1_ref[l]
        ff = act_fn(ff)
        ff = jnp.dot(ff.astype(cdt), w2_ref[l], preferred_element_type=jnp.float32) + b2_ref[l]
        h_cur = _tf_layer_norm(ff + h1, ln2w_ref[l], ln2b_ref[l])

        out_ref[l] = h_cur.reshape(bt, S, H).astype(out_ref.dtype)


# ----------------------------- wrapper ---------------------------------------
# param tuple order (per layer):
# (wq, bq, wk, bk, wv, bv, wo, bo, ln1w, ln1b, w1, b1, w2, b2, ln2w, ln2b)
_MATMUL_WEIGHT_IDX = (0, 2, 4, 6, 10, 12)


def stack_layer_params(per_layer_params, compute_dtype=jnp.bfloat16):
    """Stack per-layer param tuples along a leading layer axis; matmul weights -> bf16."""
    n = len(per_layer_params[0])
    stacked = []
    for i in range(n):
        arr = jnp.stack([lp[i] for lp in per_layer_params], axis=0)
        arr = arr.astype(compute_dtype if i in _MATMUL_WEIGHT_IDX else jnp.float32)
        stacked.append(arr)
    return tuple(stacked)


def _pick_block_batch(B, S):
    """Rows per grid step: fill the MXU M-dim (~128 rows) but keep >=2 grid steps."""
    target = max(1, 128 // max(S, 1))
    best = 1
    for d in range(1, B + 1):
        if B % d == 0 and d <= target and B // d >= 2:
            best = d
    return best


def sasrec_encoder(x, mask2d, stacked_params, *, num_heads, hidden_act,
                   output_all_encoded_layers=True, block_batch=None):
    """Encoder.forward as one fused pallas_call.  x: (B,S,H) f32, mask2d: (S,S) additive."""
    B, S, H = x.shape
    L = stacked_params[0].shape[0]
    bt = block_batch if block_batch is not None else _pick_block_batch(B, S)
    assert B % bt == 0, "block_batch must divide batch"

    in_specs = [
        pl.BlockSpec((bt, S, H), lambda b: (b, 0, 0)),   # activations for this batch block
        pl.BlockSpec((S, S), lambda b: (0, 0)),          # shared mask: resident in VMEM
    ]
    # parameters: constant index_map -> fetched once, never re-DMA'd across grid steps
    for p in stacked_params:
        in_specs.append(pl.BlockSpec(p.shape, lambda b, n=p.ndim: (0,) * n))

    param_bytes = sum(int(np.prod(p.shape)) * p.dtype.itemsize for p in stacked_params)
    act_bytes = 4 * 2 * ((2 + L) * bt * S * H + S * S)   # double-buffered act/out blocks
    vmem_limit = int(min(max(2 * param_bytes + act_bytes + (4 << 20), 32 << 20), 64 << 20))

    kernel = functools.partial(sasrec_encoder_kernel, num_layers=L,
                               num_heads=num_heads, act_name=hidden_act)
    out = pl.pallas_call(
        kernel,
        out_shape=jax.ShapeDtypeStruct((L, B, S, H), x.dtype),
        grid=(B // bt,),
        in_specs=in_specs,
        out_specs=pl.BlockSpec((L, bt, S, H), lambda b: (0, b, 0, 0)),
        scratch_shapes=[pltpu.VMEM((bt, S, H), jnp.float32)],
        compiler_params=pltpu.CompilerParams(
            dimension_semantics=("parallel",),
            vmem_limit_bytes=vmem_limit),
    )(x, mask2d, *stacked_params)

    if output_all_encoded_layers:
        return [out[l] for l in range(L)]
    return [out[L - 1]]


# ----------------------------- pure-JAX f32 reference ------------------------
def reference_layer(x, mask2d, params, *, num_heads, hidden_act):
    (wq, bq, wk, bk, wv, bv, wo, bo, ln1w, ln1b, w1, b1, w2, b2, ln2w, ln2b) = params
    act_fn = ACT2FN[hidden_act]
    B, S, H = x.shape
    dh = H // num_heads
    q = (x @ wq + bq).reshape(B, S, num_heads, dh).transpose(0, 2, 1, 3)
    k = (x @ wk + bk).reshape(B, S, num_heads, dh).transpose(0, 2, 1, 3)
    v = (x @ wv + bv).reshape(B, S, num_heads, dh).transpose(0, 2, 1, 3)
    scores = jnp.einsum("bhqd,bhkd->bhqk", q, k) / math.sqrt(dh) + mask2d[None, None]
    probs = jax.nn.softmax(scores, axis=-1)
    ctx = jnp.einsum("bhqk,bhkd->bhqd", probs, v).transpose(0, 2, 1, 3).reshape(B, S, H)
    h1 = _tf_layer_norm(ctx @ wo + bo + x, ln1w, ln1b)
    ff = act_fn(h1 @ w1 + b1) @ w2 + b2
    return _tf_layer_norm(ff + h1, ln2w, ln2b)


# ----------------------------- param init ------------------------------------
def init_layer_params(key, H):
    ks = jax.random.split(key, 10)
    f = lambda k, shape: 0.02 * jax.random.normal(k, shape, jnp.float32)
    wq, wk, wv, wo = (f(ks[i], (H, H)) for i in range(4))
    bq, bk, bv, bo = (f(ks[4 + i], (1, H)) for i in range(4))
    w1 = f(ks[8], (H, 4 * H)); b1 = jnp.zeros((1, 4 * H), jnp.float32)
    w2 = f(ks[9], (4 * H, H)); b2 = jnp.zeros((1, H), jnp.float32)
    ln1w = jnp.ones((1, H), jnp.float32); ln1b = jnp.zeros((1, H), jnp.float32)
    ln2w = jnp.ones((1, H), jnp.float32); ln2b = jnp.zeros((1, H), jnp.float32)
    return (wq, bq, wk, bk, wv, bv, wo, bo, ln1w, ln1b, w1, b1, w2, b2, ln2w, ln2b)


# ----------------------------- main -------------------------------------------
if __name__ == "__main__":
    B, S, H = 2, 8, 32
    NUM_HEADS = 2
    NUM_LAYERS = 2
    # Demo instantiation of ACT2FN uses 'relu' (exact semantics, safe TPU lowering);
    # 'gelu' (exact erf) and 'swish' are implemented above as well.
    HIDDEN_ACT = "relu"

    key = jax.random.PRNGKey(0)
    kx, kp = jax.random.split(key)
    x = jax.random.normal(kx, (B, S, H), jnp.float32)

    # SASRec-style additive causal mask (0 attend / -10000 masked), shared across batch.
    # TODO(synk): per-row padding masks would need a (B,S,S) input spec streamed per block.
    causal = jnp.tril(jnp.ones((S, S), jnp.float32))
    mask2d = (1.0 - causal) * -10000.0

    # Encoder uses copy.deepcopy(layer): every layer starts with identical weights.
    layer_params = init_layer_params(kp, H)
    per_layer = [layer_params] * NUM_LAYERS
    stacked = stack_layer_params(per_layer, compute_dtype=jnp.bfloat16)

    outs = sasrec_encoder(x, mask2d, stacked, num_heads=NUM_HEADS,
                          hidden_act=HIDDEN_ACT, output_all_encoded_layers=True)
    outs = jax.block_until_ready(outs)

    # correctness check against a pure-JAX f32 reference of the same module
    # (kernel matmuls run in bf16 -> slightly looser tolerance)
    ref = x
    for i in range(NUM_LAYERS):
        ref = reference_layer(ref, mask2d, layer_params,
                              num_heads=NUM_HEADS, hidden_act=HIDDEN_ACT)
        np.testing.assert_allclose(np.asarray(outs[i]), np.asarray(ref),
                                   rtol=2e-2, atol=2e-2)

    print("KERNEL_OK")
</pallas_src>

<mosaic_0001>
module attributes {stable_mosaic.version = 11 : i64} {
  func.func @sasrec_encoder_kernel(%arg0: i32, %arg1: memref<1x8x32xf32, #tpu.memory_space<vmem>>, %arg2: memref<8x8xf32, #tpu.memory_space<vmem>>, %arg3: memref<2x32x32xbf16, #tpu.memory_space<vmem>>, %arg4: memref<2x1x32xf32, #tpu.memory_space<vmem>>, %arg5: memref<2x32x32xbf16, #tpu.memory_space<vmem>>, %arg6: memref<2x1x32xf32, #tpu.memory_space<vmem>>, %arg7: memref<2x32x32xbf16, #tpu.memory_space<vmem>>, %arg8: memref<2x1x32xf32, #tpu.memory_space<vmem>>, %arg9: memref<2x32x32xbf16, #tpu.memory_space<vmem>>, %arg10: memref<2x1x32xf32, #tpu.memory_space<vmem>>, %arg11: memref<2x1x32xf32, #tpu.memory_space<vmem>>, %arg12: memref<2x1x32xf32, #tpu.memory_space<vmem>>, %arg13: memref<2x32x128xbf16, #tpu.memory_space<vmem>>, %arg14: memref<2x1x128xf32, #tpu.memory_space<vmem>>, %arg15: memref<2x128x32xbf16, #tpu.memory_space<vmem>>, %arg16: memref<2x1x32xf32, #tpu.memory_space<vmem>>, %arg17: memref<2x1x32xf32, #tpu.memory_space<vmem>>, %arg18: memref<2x1x32xf32, #tpu.memory_space<vmem>>, %arg19: memref<2x1x8x32xf32, #tpu.memory_space<vmem>>, %arg20: memref<1x8x32xf32, #tpu.memory_space<vmem>>) attributes {dimension_semantics = [#tpu.dimension_semantics<parallel>], iteration_bounds = array<i64: 2>, scalar_prefetch = 0 : i64, scratch_operands = 1 : i64, tpu.core_type = #tpu.core_type<tc>, window_params = [{transform_indices = @transform_0, window_bounds = array<i64: 1, 8, 32>}, {pipeline_mode = #tpu.pipeline_mode<synchronous>, transform_indices = @transform_1, window_bounds = array<i64: 8, 8>}, {pipeline_mode = #tpu.pipeline_mode<synchronous>, transform_indices = @transform_2, window_bounds = array<i64: 2, 32, 32>}, {pipeline_mode = #tpu.pipeline_mode<synchronous>, transform_indices = @transform_3, window_bounds = array<i64: 2, 1, 32>}, {pipeline_mode = #tpu.pipeline_mode<synchronous>, transform_indices = @transform_4, window_bounds = array<i64: 2, 32, 32>}, {pipeline_mode = #tpu.pipeline_mode<synchronous>, transform_indices = @transform_5, window_bounds = array<i64: 2, 1, 32>}, {pipeline_mode = #tpu.pipeline_mode<synchronous>, transform_indices = @transform_6, window_bounds = array<i64: 2, 32, 32>}, {pipeline_mode = #tpu.pipeline_mode<synchronous>, transform_indices = @transform_7, window_bounds = array<i64: 2, 1, 32>}, {pipeline_mode = #tpu.pipeline_mode<synchronous>, transform_indices = @transform_8, window_bounds = array<i64: 2, 32, 32>}, {pipeline_mode = #tpu.pipeline_mode<synchronous>, transform_indices = @transform_9, window_bounds = array<i64: 2, 1, 32>}, {pipeline_mode = #tpu.pipeline_mode<synchronous>, transform_indices = @transform_10, window_bounds = array<i64: 2, 1, 32>}, {pipeline_mode = #tpu.pipeline_mode<synchronous>, transform_indices = @transform_11, window_bounds = array<i64: 2, 1, 32>}, {pipeline_mode = #tpu.pipeline_mode<synchronous>, transform_indices = @transform_12, window_bounds = array<i64: 2, 32, 128>}, {pipeline_mode = #tpu.pipeline_mode<synchronous>, transform_indices = @transform_13, window_bounds = array<i64: 2, 1, 128>}, {pipeline_mode = #tpu.pipeline_mode<synchronous>, transform_indices = @transform_14, window_bounds = array<i64: 2, 128, 32>}, {pipeline_mode = #tpu.pipeline_mode<synchronous>, transform_indices = @transform_15, window_bounds = array<i64: 2, 1, 32>}, {pipeline_mode = #tpu.pipeline_mode<synchronous>, transform_indices = @transform_16, window_bounds = array<i64: 2, 1, 32>}, {pipeline_mode = #tpu.pipeline_mode<synchronous>, transform_indices = @transform_17, window_bounds = array<i64: 2, 1, 32>}, {transform_indices = @transform_18, window_bounds = array<i64: 2, 1, 8, 32>}]} {
    %c0 = arith.constant 0 : index
    %c0_0 = arith.constant 0 : index
    %0 = vector.load %arg2[%c0, %c0_0] : memref<8x8xf32, #tpu.memory_space<vmem>>, vector<8x8xf32>
    %c0_1 = arith.constant 0 : index
    %c0_2 = arith.constant 0 : index
    %c0_3 = arith.constant 0 : index
    %1 = vector.load %arg1[%c0_1, %c0_2, %c0_3] : memref<1x8x32xf32, #tpu.memory_space<vmem>>, vector<1x8x32xf32>
    %2 = vector.shape_cast %1 : vector<1x8x32xf32> to vector<8x32xf32>
    %3 = arith.truncf %2 : vector<8x32xf32> to vector<8x32xbf16>
    %c0_4 = arith.constant 0 : index
    %c0_5 = arith.constant 0 : index
    %c0_6 = arith.constant 0 : index
    %4 = vector.load %arg3[%c0_4, %c0_5, %c0_6] : memref<2x32x32xbf16, #tpu.memory_space<vmem>>, vector<1x32x32xbf16>
    %5 = vector.shape_cast %4 : vector<1x32x32xbf16> to vector<32x32xbf16>
    %cst = arith.constant dense<0.000000e+00> : vector<8x32xf32>
    %6 = tpu.matmul %3, %5, %cst {dimension_numbers = #tpu.dot_dimension_numbers<[1], [0], [0], [1], [0, 0, 1, 1], [], []>} : vector<8x32xbf16>, vector<32x32xbf16>, vector<8x32xf32> -> vector<8x32xf32>
    %c0_7 = arith.constant 0 : index
    %c0_8 = arith.constant 0 : index
    %c0_9 = arith.constant 0 : index
    %7 = vector.load %arg4[%c0_7, %c0_8, %c0_9] : memref<2x1x32xf32, #tpu.memory_space<vmem>>, vector<1x1x32xf32>
    %8 = vector.shape_cast %7 : vector<1x1x32xf32> to vector<1x32xf32>
    %9 = vector.broadcast %8 : vector<1x32xf32> to vector<8x32xf32>
    %10 = arith.addf %6, %9 : vector<8x32xf32>
    %c0_10 = arith.constant 0 : index
    %c0_11 = arith.constant 0 : index
    %c0_12 = arith.constant 0 : index
    %11 = vector.load %arg5[%c0_10, %c0_11, %c0_12] : memref<2x32x32xbf16, #tpu.memory_space<vmem>>, vector<1x32x32xbf16>
    %12 = vector.shape_cast %11 : vector<1x32x32xbf16> to vector<32x32xbf16>
    %cst_13 = arith.constant dense<0.000000e+00> : vector<8x32xf32>
    %13 = tpu.matmul %3, %12, %cst_13 {dimension_numbers = #tpu.dot_dimension_numbers<[1], [0], [0], [1], [0, 0, 1, 1], [], []>} : vector<8x32xbf16>, vector<32x32xbf16>, vector<8x32xf32> -> vector<8x32xf32>
    %c0_14 = arith.constant 0 : index
    %c0_15 = arith.constant 0 : index
    %c0_16 = arith.constant 0 : index
    %14 = vector.load %arg6[%c0_14, %c0_15, %c0_16] : memref<2x1x32xf32, #tpu.memory_space<vmem>>, vector<1x1x32xf32>
    %15 = vector.shape_cast %14 : vector<1x1x32xf32> to vector<1x32xf32>
    %16 = vector.broadcast %15 : vector<1x32xf32> to vector<8x32xf32>
    %17 = arith.addf %13, %16 : vector<8x32xf32>
    %c0_17 = arith.constant 0 : index
    %c0_18 = arith.constant 0 : index
    %c0_19 = arith.constant 0 : index
    %18 = vector.load %arg7[%c0_17, %c0_18, %c0_19] : memref<2x32x32xbf16, #tpu.memory_space<vmem>>, vector<1x32x32xbf16>
    %19 = vector.shape_cast %18 : vector<1x32x32xbf16> to vector<32x32xbf16>
    %cst_20 = arith.constant dense<0.000000e+00> : vector<8x32xf32>
    %20 = tpu.matmul %3, %19, %cst_20 {dimension_numbers = #tpu.dot_dimension_numbers<[1], [0], [0], [1], [0, 0, 1, 1], [], []>} : vector<8x32xbf16>, vector<32x32xbf16>, vector<8x32xf32> -> vector<8x32xf32>
    %c0_21 = arith.constant 0 : index
    %c0_22 = arith.constant 0 : index
    %c0_23 = arith.constant 0 : index
    %21 = vector.load %arg8[%c0_21, %c0_22, %c0_23] : memref<2x1x32xf32, #tpu.memory_space<vmem>>, vector<1x1x32xf32>
    %22 = vector.shape_cast %21 : vector<1x1x32xf32> to vector<1x32xf32>
    %23 = vector.broadcast %22 : vector<1x32xf32> to vector<8x32xf32>
    %24 = arith.addf %20, %23 : vector<8x32xf32>
    %25 = arith.truncf %10 : vector<8x32xf32> to vector<8x32xbf16>
    %26 = vector.shape_cast %25 : vector<8x32xbf16> to vector<1x8x32xbf16>
    %27 = arith.truncf %17 : vector<8x32xf32> to vector<8x32xbf16>
    %28 = vector.shape_cast %27 : vector<8x32xbf16> to vector<1x8x32xbf16>
    %29 = arith.truncf %24 : vector<8x32xf32> to vector<8x32xbf16>
    %30 = vector.shape_cast %29 : vector<8x32xbf16> to vector<1x8x32xbf16>
    %31 = vector.extract_strided_slice %26 {offsets = [0, 0, 0], sizes = [1, 8, 16], strides = [1, 1, 1]} : vector<1x8x32xbf16> to vector<1x8x16xbf16>
    %32 = vector.extract_strided_slice %28 {offsets = [0, 0, 0], sizes = [1, 8, 16], strides = [1, 1, 1]} : vector<1x8x32xbf16> to vector<1x8x16xbf16>
    "tpu.trace_start"() <{level = 10 : i32, message = "bqd,bkd->bqk"}> : () -> ()
    %cst_24 = arith.constant dense<0.000000e+00> : vector<1x8x8xf32>
    %33 = tpu.matmul %31, %32, %cst_24 {dimension_numbers = #tpu.dot_dimension_numbers<[2], [2], [1], [1], [0, 0, 0, 1, 1, 1], [0], [0]>} : vector<1x8x16xbf16>, vector<1x8x16xbf16>, vector<1x8x8xf32> -> vector<1x8x8xf32>
    "tpu.trace_stop"() : () -> ()
    %cst_25 = arith.constant 2.500000e-01 : f32
    %34 = vector.broadcast %cst_25 : f32 to vector<1x8x8xf32>
    %35 = arith.mulf %33, %34 : vector<1x8x8xf32>
    %36 = vector.shape_cast %0 : vector<8x8xf32> to vector<1x8x8xf32>
    %37 = arith.addf %35, %36 : vector<1x8x8xf32>
    %cst_26 = arith.constant dense<0xFF800000> : vector<1x8xf32>
    %38 = vector.multi_reduction <maximumf>, %37, %cst_26 [2] : vector<1x8x8xf32> to vector<1x8xf32>
    %39 = vector.shape_cast %38 : vector<1x8xf32> to vector<1x8x1xf32>
    %40 = vector.broadcast %39 : vector<1x8x1xf32> to vector<1x8x8xf32>
    %41 = arith.subf %37, %40 : vector<1x8x8xf32>
    %42 = math.exp %41 : vector<1x8x8xf32>
    %cst_27 = arith.constant dense<0.000000e+00> : vector<1x8xf32>
    %43 = vector.multi_reduction <add>, %42, %cst_27 [2] : vector<1x8x8xf32> to vector<1x8xf32>
    %44 = vector.shape_cast %43 : vector<1x8xf32> to vector<1x8x1xf32>
    %45 = tpu.reciprocal %44 {approx = true} : vector<1x8x1xf32> -> vector<1x8x1xf32>
    %46 = vector.broadcast %45 : vector<1x8x1xf32> to vector<1x8x8xf32>
    %47 = arith.mulf %42, %46 : vector<1x8x8xf32>
    %48 = arith.truncf %47 : vector<1x8x8xf32> to vector<1x8x8xbf16>
    %49 = vector.extract_strided_slice %30 {offsets = [0, 0, 0], sizes = [1, 8, 16], strides = [1, 1, 1]} : vector<1x8x32xbf16> to vector<1x8x16xbf16>
    "tpu.trace_start"() <{level = 10 : i32, message = "bqk,bkd->bqd"}> : () -> ()
    %cst_28 = arith.constant dense<0.000000e+00> : vector<1x8x16xf32>
    %50 = tpu.matmul %48, %49, %cst_28 {dimension_numbers = #tpu.dot_dimension_numbers<[2], [1], [1], [2], [0, 0, 0, 1, 1, 2], [0], [0]>} : vector<1x8x8xbf16>, vector<1x8x16xbf16>, vector<1x8x16xf32> -> vector<1x8x16xf32>
    "tpu.trace_stop"() : () -> ()
    %c0_29 = arith.constant 0 : index
    %c0_30 = arith.constant 0 : index
    %c0_31 = arith.constant 0 : index
    %51 = vector.load %arg20[%c0_29, %c0_30, %c0_31] : memref<1x8x32xf32, #tpu.memory_space<vmem>>, vector<1x8x16xf32>
    tpu.vector_store %arg20[%c0_29, %c0_30, %c0_31], %50 {strides = array<i32>} : memref<1x8x32xf32, #tpu.memory_space<vmem>>, vector<1x8x16xf32>,
    %52 = vector.extract_strided_slice %26 {offsets = [0, 0, 16], sizes = [1, 8, 16], strides = [1, 1, 1]} : vector<1x8x32xbf16> to vector<1x8x16xbf16>
    %53 = vector.extract_strided_slice %28 {offsets = [0, 0, 16], sizes = [1, 8, 16], strides = [1, 1, 1]} : vector<1x8x32xbf16> to vector<1x8x16xbf16>
    "tpu.trace_start"() <{level = 10 : i32, message = "bqd,bkd->bqk"}> : () -> ()
    %cst_32 = arith.constant dense<0.000000e+00> : vector<1x8x8xf32>
    %54 = tpu.matmul %52, %53, %cst_32 {dimension_numbers = #tpu.dot_dimension_numbers<[2], [2], [1], [1], [0, 0, 0, 1, 1, 1], [0], [0]>} : vector<1x8x16xbf16>, vector<1x8x16xbf16>, vector<1x8x8xf32> -> vector<1x8x8xf32>
    "tpu.trace_stop"() : () -> ()
    %cst_33 = arith.constant 2.500000e-01 : f32
    %55 = vector.broadcast %cst_33 : f32 to vector<1x8x8xf32>
    %56 = arith.mulf %54, %55 : vector<1x8x8xf32>
    %57 = vector.shape_cast %0 : vector<8x8xf32> to vector<1x8x8xf32>
    %58 = arith.addf %56, %57 : vector<1x8x8xf32>
    %cst_34 = arith.constant dense<0xFF800000> : vector<1x8xf32>
    %59 = vector.multi_reduction <maximumf>, %58, %cst_34 [2] : vector<1x8x8xf32> to vector<1x8xf32>
    %60 = vector.shape_cast %59 : vector<1x8xf32> to vector<1x8x1xf32>
    %61 = vector.broadcast %60 : vector<1x8x1xf32> to vector<1x8x8xf32>
    %62 = arith.subf %58, %61 : vector<1x8x8xf32>
    %63 = math.exp %62 : vector<1x8x8xf32>
    %cst_35 = arith.constant dense<0.000000e+00> : vector<1x8xf32>
    %64 = vector.multi_reduction <add>, %63, %cst_35 [2] : vector<1x8x8xf32> to vector<1x8xf32>
    %65 = vector.shape_cast %64 : vector<1x8xf32> to vector<1x8x1xf32>
    %66 = tpu.reciprocal %65 {approx = true} : vector<1x8x1xf32> -> vector<1x8x1xf32>
    %67 = vector.broadcast %66 : vector<1x8x1xf32> to vector<1x8x8xf32>
    %68 = arith.mulf %63, %67 : vector<1x8x8xf32>
    %69 = arith.truncf %68 : vector<1x8x8xf32> to vector<1x8x8xbf16>
    %70 = vector.extract_strided_slice %30 {offsets = [0, 0, 16], sizes = [1, 8, 16], strides = [1, 1, 1]} : vector<1x8x32xbf16> to vector<1x8x16xbf16>
    "tpu.trace_start"() <{level = 10 : i32, message = "bqk,bkd->bqd"}> : () -> ()
    %cst_36 = arith.constant dense<0.000000e+00> : vector<1x8x16xf32>
    %71 = tpu.matmul %69, %70, %cst_36 {dimension_numbers = #tpu.dot_dimension_numbers<[2], [1], [1], [2], [0, 0, 0, 1, 1, 2], [0], [0]>} : vector<1x8x8xbf16>, vector<1x8x16xbf16>, vector<1x8x16xf32> -> vector<1x8x16xf32>
    "tpu.trace_stop"() : () -> ()
    %c0_37 = arith.constant 0 : index
    %c0_38 = arith.constant 0 : index
    %c16 = arith.constant 16 : index
    %72 = vector.load %arg20[%c0_37, %c0_38, %c16] : memref<1x8x32xf32, #tpu.memory_space<vmem>>, vector<1x8x16xf32>
    tpu.vector_store %arg20[%c0_37, %c0_38, %c16], %71 {strides = array<i32>} : memref<1x8x32xf32, #tpu.memory_space<vmem>>, vector<1x8x16xf32>,
    %c0_39 = arith.constant 0 : index
    %c0_40 = arith.constant 0 : index
    %c0_41 = arith.constant 0 : index
    %73 = vector.load %arg20[%c0_39, %c0_40, %c0_41] : memref<1x8x32xf32, #tpu.memory_space<vmem>>, vector<1x8x32xf32>
    %74 = vector.shape_cast %73 : vector<1x8x32xf32> to vector<8x32xf32>
    %75 = arith.truncf %74 : vector<8x32xf32> to vector<8x32xbf16>
    %c0_42 = arith.constant 0 : index
    %c0_43 = arith.constant 0 : index
    %c0_44 = arith.constant 0 : index
    %76 = vector.load %arg9[%c0_42, %c0_43, %c0_44] : memref<2x32x32xbf16, #tpu.memory_space<vmem>>, vector<1x32x32xbf16>
    %77 = vector.shape_cast %76 : vector<1x32x32xbf16> to vector<32x32xbf16>
    %cst_45 = arith.constant dense<0.000000e+00> : vector<8x32xf32>
    %78 = tpu.matmul %75, %77, %cst_45 {dimension_numbers = #tpu.dot_dimension_numbers<[1], [0], [0], [1], [0, 0, 1, 1], [], []>} : vector<8x32xbf16>, vector<32x32xbf16>, vector<8x32xf32> -> vector<8x32xf32>
    %c0_46 = arith.constant 0 : index
    %c0_47 = arith.constant 0 : index
    %c0_48 = arith.constant 0 : index
    %79 = vector.load %arg10[%c0_46, %c0_47, %c0_48] : memref<2x1x32xf32, #tpu.memory_space<vmem>>, vector<1x1x32xf32>
    %80 = vector.shape_cast %79 : vector<1x1x32xf32> to vector<1x32xf32>
    %81 = vector.broadcast %80 : vector<1x32xf32> to vector<8x32xf32>
    %82 = arith.addf %78, %81 : vector<8x32xf32>
    %83 = arith.addf %82, %2 : vector<8x32xf32>
    %c0_49 = arith.constant 0 : index
    %c0_50 = arith.constant 0 : index
    %c0_51 = arith.constant 0 : index
    %84 = vector.load %arg11[%c0_49, %c0_50, %c0_51] : memref<2x1x32xf32, #tpu.memory_space<vmem>>, vector<1x1x32xf32>
    %85 = vector.shape_cast %84 : vector<1x1x32xf32> to vector<1x32xf32>
    %c0_52 = arith.constant 0 : index
    %c0_53 = arith.constant 0 : index
    %c0_54 = arith.constant 0 : index
    %86 = vector.load %arg12[%c0_52, %c0_53, %c0_54] : memref<2x1x32xf32, #tpu.memory_space<vmem>>, vector<1x1x32xf32>
    %87 = vector.shape_cast %86 : vector<1x1x32xf32> to vector<1x32xf32>
    %cst_55 = arith.constant dense<0.000000e+00> : vector<8xf32>
    %88 = vector.multi_reduction <add>, %83, %cst_55 [1] : vector<8x32xf32> to vector<8xf32>
    %89 = vector.shape_cast %88 : vector<8xf32> to vector<8x1xf32>
    %cst_56 = arith.constant 3.200000e+01 : f32
    %90 = vector.broadcast %cst_56 : f32 to vector<8x1xf32>
    %91 = arith.divf %89, %90 : vector<8x1xf32>
    %92 = vector.broadcast %91 : vector<8x1xf32> to vector<8x32xf32>
    %93 = arith.subf %83, %92 : vector<8x32xf32>
    %94 = arith.mulf %93, %93 : vector<8x32xf32>
    %cst_57 = arith.constant dense<0.000000e+00> : vector<8xf32>
    %95 = vector.multi_reduction <add>, %94, %cst_57 [1] : vector<8x32xf32> to vector<8xf32>
    %96 = vector.shape_cast %95 : vector<8xf32> to vector<8x1xf32>
    %cst_58 = arith.constant 3.200000e+01 : f32
    %97 = vector.broadcast %cst_58 : f32 to vector<8x1xf32>
    %98 = arith.divf %96, %97 : vector<8x1xf32>
    %99 = vector.broadcast %91 : vector<8x1xf32> to vector<8x32xf32>
    %100 = arith.subf %83, %99 : vector<8x32xf32>
    %cst_59 = arith.constant 9.99999996E-13 : f32
    %101 = vector.broadcast %cst_59 : f32 to vector<8x1xf32>
    %102 = arith.addf %98, %101 : vector<8x1xf32>
    %103 = math.sqrt %102 : vector<8x1xf32>
    %104 = vector.broadcast %103 : vector<8x1xf32> to vector<8x32xf32>
    %105 = arith.divf %100, %104 : vector<8x32xf32>
    %106 = vector.broadcast %85 : vector<1x32xf32> to vector<8x32xf32>
    %107 = arith.mulf %106, %105 : vector<8x32xf32>
    %108 = vector.broadcast %87 : vector<1x32xf32> to vector<8x32xf32>
    %109 = arith.addf %107, %108 : vector<8x32xf32>
    %110 = arith.truncf %109 : vector<8x32xf32> to vector<8x32xbf16>
    %c0_60 = arith.constant 0 : index
    %c0_61 = arith.constant 0 : index
    %c0_62 = arith.constant 0 : index
    %111 = vector.load %arg13[%c0_60, %c0_61, %c0_62] : memref<2x32x128xbf16, #tpu.memory_space<vmem>>, vector<1x32x128xbf16>
    %112 = vector.shape_cast %111 : vector<1x32x128xbf16> to vector<32x128xbf16>
    %cst_63 = arith.constant dense<0.000000e+00> : vector<8x128xf32>
    %113 = tpu.matmul %110, %112, %cst_63 {dimension_numbers = #tpu.dot_dimension_numbers<[1], [0], [0], [1], [0, 0, 1, 1], [], []>} : vector<8x32xbf16>, vector<32x128xbf16>, vector<8x128xf32> -> vector<8x128xf32>
    %c0_64 = arith.constant 0 : index
    %c0_65 = arith.constant 0 : index
    %c0_66 = arith.constant 0 : index
    %114 = vector.load %arg14[%c0_64, %c0_65, %c0_66] : memref<2x1x128xf32, #tpu.memory_space<vmem>>, vector<1x1x128xf32>
    %115 = vector.shape_cast %114 : vector<1x1x128xf32> to vector<1x128xf32>
    %116 = vector.broadcast %115 : vector<1x128xf32> to vector<8x128xf32>
    %117 = arith.addf %113, %116 : vector<8x128xf32>
    %cst_67 = arith.constant 0.000000e+00 : f32
    %118 = vector.broadcast %cst_67 : f32 to vector<8x128xf32>
    %119 = arith.maximumf %117, %118 : vector<8x128xf32>
    %120 = arith.truncf %119 : vector<8x128xf32> to vector<8x128xbf16>
    %c0_68 = arith.constant 0 : index
    %c0_69 = arith.constant 0 : index
    %c0_70 = arith.constant 0 : index
    %121 = vector.load %arg15[%c0_68, %c0_69, %c0_70] : memref<2x128x32xbf16, #tpu.memory_space<vmem>>, vector<1x128x32xbf16>
    %122 = vector.shape_cast %121 : vector<1x128x32xbf16> to vector<128x32xbf16>
    %cst_71 = arith.constant dense<0.000000e+00> : vector<8x32xf32>
    %123 = tpu.matmul %120, %122, %cst_71 {dimension_numbers = #tpu.dot_dimension_numbers<[1], [0], [0], [1], [0, 0, 1, 1], [], []>} : vector<8x128xbf16>, vector<128x32xbf16>, vector<8x32xf32> -> vector<8x32xf32>
    %c0_72 = arith.constant 0 : index
    %c0_73 = arith.constant 0 : index
    %c0_74 = arith.constant 0 : index
    %124 = vector.load %arg16[%c0_72, %c0_73, %c0_74] : memref<2x1x32xf32, #tpu.memory_space<vmem>>, vector<1x1x32xf32>
    %125 = vector.shape_cast %124 : vector<1x1x32xf32> to vector<1x32xf32>
    %126 = vector.broadcast %125 : vector<1x32xf32> to vector<8x32xf32>
    %127 = arith.addf %123, %126 : vector<8x32xf32>
    %128 = arith.addf %127, %109 : vector<8x32xf32>
    %c0_75 = arith.constant 0 : index
    %c0_76 = arith.constant 0 : index
    %c0_77 = arith.constant 0 : index
    %129 = vector.load %arg17[%c0_75, %c0_76, %c0_77] : memref<2x1x32xf32, #tpu.memory_space<vmem>>, vector<1x1x32xf32>
    %130 = vector.shape_cast %129 : vector<1x1x32xf32> to vector<1x32xf32>
    %c0_78 = arith.constant 0 : index
    %c0_79 = arith.constant 0 : index
    %c0_80 = arith.constant 0 : index
    %131 = vector.load %arg18[%c0_78, %c0_79, %c0_80] : memref<2x1x32xf32, #tpu.memory_space<vmem>>, vector<1x1x32xf32>
    %132 = vector.shape_cast %131 : vector<1x1x32xf32> to vector<1x32xf32>
    %cst_81 = arith.constant dense<0.000000e+00> : vector<8xf32>
    %133 = vector.multi_reduction <add>, %128, %cst_81 [1] : vector<8x32xf32> to vector<8xf32>
    %134 = vector.shape_cast %133 : vector<8xf32> to vector<8x1xf32>
    %cst_82 = arith.constant 3.200000e+01 : f32
    %135 = vector.broadcast %cst_82 : f32 to vector<8x1xf32>
    %136 = arith.divf %134, %135 : vector<8x1xf32>
    %137 = vector.broadcast %136 : vector<8x1xf32> to vector<8x32xf32>
    %138 = arith.subf %128, %137 : vector<8x32xf32>
    %139 = arith.mulf %138, %138 : vector<8x32xf32>
    %cst_83 = arith.constant dense<0.000000e+00> : vector<8xf32>
    %140 = vector.multi_reduction <add>, %139, %cst_83 [1] : vector<8x32xf32> to vector<8xf32>
    %141 = vector.shape_cast %140 : vector<8xf32> to vector<8x1xf32>
    %cst_84 = arith.constant 3.200000e+01 : f32
    %142 = vector.broadcast %cst_84 : f32 to vector<8x1xf32>
    %143 = arith.divf %141, %142 : vector<8x1xf32>
    %144 = vector.broadcast %136 : vector<8x1xf32> to vector<8x32xf32>
    %145 = arith.subf %128, %144 : vector<8x32xf32>
    %cst_85 = arith.constant 9.99999996E-13 : f32
    %146 = vector.broadcast %cst_85 : f32 to vector<8x1xf32>
    %147 = arith.addf %143, %146 : vector<8x1xf32>
    %148 = math.sqrt %147 : vector<8x1xf32>
    %149 = vector.broadcast %148 : vector<8x1xf32> to vector<8x32xf32>
    %150 = arith.divf %145, %149 : vector<8x32xf32>
    %151 = vector.broadcast %130 : vector<1x32xf32> to vector<8x32xf32>
    %152 = arith.mulf %151, %150 : vector<8x32xf32>
    %153 = vector.broadcast %132 : vector<1x32xf32> to vector<8x32xf32>
    %154 = arith.addf %152, %153 : vector<8x32xf32>
    %155 = vector.shape_cast %154 : vector<8x32xf32> to vector<1x8x32xf32>
    %c0_86 = arith.constant 0 : index
    %c0_87 = arith.constant 0 : index
    %c0_88 = arith.constant 0 : index
    %c0_89 = arith.constant 0 : index
    %156 = vector.load %arg19[%c0_86, %c0_87, %c0_88, %c0_89] : memref<2x1x8x32xf32, #tpu.memory_space<vmem>>, vector<1x1x8x32xf32>
    %157 = vector.shape_cast %156 : vector<1x1x8x32xf32> to vector<1x8x32xf32>
    %158 = vector.shape_cast %155 : vector<1x8x32xf32> to vector<1x1x8x32xf32>
    tpu.vector_store %arg19[%c0_86, %c0_87, %c0_88, %c0_89], %158 {strides = array<i32>} : memref<2x1x8x32xf32, #tpu.memory_space<vmem>>, vector<1x1x8x32xf32>,
    %159 = arith.truncf %154 : vector<8x32xf32> to vector<8x32xbf16>
    %c1 = arith.constant 1 : index
    %c0_90 = arith.constant 0 : index
    %c0_91 = arith.constant 0 : index
    %160 = vector.load %arg3[%c1, %c0_90, %c0_91] : memref<2x32x32xbf16, #tpu.memory_space<vmem>>, vector<1x32x32xbf16>
    %161 = vector.shape_cast %160 : vector<1x32x32xbf16> to vector<32x32xbf16>
    %cst_92 = arith.constant dense<0.000000e+00> : vector<8x32xf32>
    %162 = tpu.matmul %159, %161, %cst_92 {dimension_numbers = #tpu.dot_dimension_numbers<[1], [0], [0], [1], [0, 0, 1, 1], [], []>} : vector<8x32xbf16>, vector<32x32xbf16>, vector<8x32xf32> -> vector<8x32xf32>
    %c1_93 = arith.constant 1 : index
    %c0_94 = arith.constant 0 : index
    %c0_95 = arith.constant 0 : index
    %163 = vector.load %arg4[%c1_93, %c0_94, %c0_95] : memref<2x1x32xf32, #tpu.memory_space<vmem>>, vector<1x1x32xf32>
    %164 = vector.shape_cast %163 : vector<1x1x32xf32> to vector<1x32xf32>
    %165 = vector.broadcast %164 : vector<1x32xf32> to vector<8x32xf32>
    %166 = arith.addf %162, %165 : vector<8x32xf32>
    %c1_96 = arith.constant 1 : index
    %c0_97 = arith.constant 0 : index
    %c0_98 = arith.constant 0 : index
    %167 = vector.load %arg5[%c1_96, %c0_97, %c0_98] : memref<2x32x32xbf16, #tpu.memory_space<vmem>>, vector<1x32x32xbf16>
    %168 = vector.shape_cast %167 : vector<1x32x32xbf16> to vector<32x32xbf16>
    %cst_99 = arith.constant dense<0.000000e+00> : vector<8x32xf32>
    %169 = tpu.matmul %159, %168, %cst_99 {dimension_numbers = #tpu.dot_dimension_numbers<[1], [0], [0], [1], [0, 0, 1, 1], [], []>} : vector<8x32xbf16>, vector<32x32xbf16>, vector<8x32xf32> -> vector<8x32xf32>
    %c1_100 = arith.constant 1 : index
    %c0_101 = arith.constant 0 : index
    %c0_102 = arith.constant 0 : index
    %170 = vector.load %arg6[%c1_100, %c0_101, %c0_102] : memref<2x1x32xf32, #tpu.memory_space<vmem>>, vector<1x1x32xf32>
    %171 = vector.shape_cast %170 : vector<1x1x32xf32> to vector<1x32xf32>
    %172 = vector.broadcast %171 : vector<1x32xf32> to vector<8x32xf32>
    %173 = arith.addf %169, %172 : vector<8x32xf32>
    %c1_103 = arith.constant 1 : index
    %c0_104 = arith.constant 0 : index
    %c0_105 = arith.constant 0 : index
    %174 = vector.load %arg7[%c1_103, %c0_104, %c0_105] : memref<2x32x32xbf16, #tpu.memory_space<vmem>>, vector<1x32x32xbf16>
    %175 = vector.shape_cast %174 : vector<1x32x32xbf16> to vector<32x32xbf16>
    %cst_106 = arith.constant dense<0.000000e+00> : vector<8x32xf32>
    %176 = tpu.matmul %159, %175, %cst_106 {dimension_numbers = #tpu.dot_dimension_numbers<[1], [0], [0], [1], [0, 0, 1, 1], [], []>} : vector<8x32xbf16>, vector<32x32xbf16>, vector<8x32xf32> -> vector<8x32xf32>
    %c1_107 = arith.constant 1 : index
    %c0_108 = arith.constant 0 : index
    %c0_109 = arith.constant 0 : index
    %177 = vector.load %arg8[%c1_107, %c0_108, %c0_109] : memref<2x1x32xf32, #tpu.memory_space<vmem>>, vector<1x1x32xf32>
    %178 = vector.shape_cast %177 : vector<1x1x32xf32> to vector<1x32xf32>
    %179 = vector.broadcast %178 : vector<1x32xf32> to vector<8x32xf32>
    %180 = arith.addf %176, %179 : vector<8x32xf32>
    %181 = arith.truncf %166 : vector<8x32xf32> to vector<8x32xbf16>
    %182 = vector.shape_cast %181 : vector<8x32xbf16> to vector<1x8x32xbf16>
    %183 = arith.truncf %173 : vector<8x32xf32> to vector<8x32xbf16>
    %184 = vector.shape_cast %183 : vector<8x32xbf16> to vector<1x8x32xbf16>
    %185 = arith.truncf %180 : vector<8x32xf32> to vector<8x32xbf16>
    %186 = vector.shape_cast %185 : vector<8x32xbf16> to vector<1x8x32xbf16>
    %187 = vector.extract_strided_slice %182 {offsets = [0, 0, 0], sizes = [1, 8, 16], strides = [1, 1, 1]} : vector<1x8x32xbf16> to vector<1x8x16xbf16>
    %188 = vector.extract_strided_slice %184 {offsets = [0, 0, 0], sizes = [1, 8, 16], strides = [1, 1, 1]} : vector<1x8x32xbf16> to vector<1x8x16xbf16>
    "tpu.trace_start"() <{level = 10 : i32, message = "bqd,bkd->bqk"}> : () -> ()
    %cst_110 = arith.constant dense<0.000000e+00> : vector<1x8x8xf32>
    %189 = tpu.matmul %187, %188, %cst_110 {dimension_numbers = #tpu.dot_dimension_numbers<[2], [2], [1], [1], [0, 0, 0, 1, 1, 1], [0], [0]>} : vector<1x8x16xbf16>, vector<1x8x16xbf16>, vector<1x8x8xf32> -> vector<1x8x8xf32>
    "tpu.trace_stop"() : () -> ()
    %cst_111 = arith.constant 2.500000e-01 : f32
    %190 = vector.broadcast %cst_111 : f32 to vector<1x8x8xf32>
    %191 = arith.mulf %189, %190 : vector<1x8x8xf32>
    %192 = vector.shape_cast %0 : vector<8x8xf32> to vector<1x8x8xf32>
    %193 = arith.addf %191, %192 : vector<1x8x8xf32>
    %cst_112 = arith.constant dense<0xFF800000> : vector<1x8xf32>
    %194 = vector.multi_reduction <maximumf>, %193, %cst_112 [2] : vector<1x8x8xf32> to vector<1x8xf32>
    %195 = vector.shape_cast %194 : vector<1x8xf32> to vector<1x8x1xf32>
    %196 = vector.broadcast %195 : vector<1x8x1xf32> to vector<1x8x8xf32>
    %197 = arith.subf %193, %196 : vector<1x8x8xf32>
    %198 = math.exp %197 : vector<1x8x8xf32>
    %cst_113 = arith.constant dense<0.000000e+00> : vector<1x8xf32>
    %199 = vector.multi_reduction <add>, %198, %cst_113 [2] : vector<1x8x8xf32> to vector<1x8xf32>
    %200 = vector.shape_cast %199 : vector<1x8xf32> to vector<1x8x1xf32>
    %201 = tpu.reciprocal %200 {approx = true} : vector<1x8x1xf32> -> vector<1x8x1xf32>
    %202 = vector.broadcast %201 : vector<1x8x1xf32> to vector<1x8x8xf32>
    %203 = arith.mulf %198, %202 : vector<1x8x8xf32>
    %204 = arith.truncf %203 : vector<1x8x8xf32> to vector<1x8x8xbf16>
    %205 = vector.extract_strided_slice %186 {offsets = [0, 0, 0], sizes = [1, 8, 16], strides = [1, 1, 1]} : vector<1x8x32xbf16> to vector<1x8x16xbf16>
    "tpu.trace_start"() <{level = 10 : i32, message = "bqk,bkd->bqd"}> : () -> ()
    %cst_114 = arith.constant dense<0.000000e+00> : vector<1x8x16xf32>
    %206 = tpu.matmul %204, %205, %cst_114 {dimension_numbers = #tpu.dot_dimension_numbers<[2], [1], [1], [2], [0, 0, 0, 1, 1, 2], [0], [0]>} : vector<1x8x8xbf16>, vector<1x8x16xbf16>, vector<1x8x16xf32> -> vector<1x8x16xf32>
    "tpu.trace_stop"() : () -> ()
    %c0_115 = arith.constant 0 : index
    %c0_116 = arith.constant 0 : index
    %c0_117 = arith.constant 0 : index
    %207 = vector.load %arg20[%c0_115, %c0_116, %c0_117] : memref<1x8x32xf32, #tpu.memory_space<vmem>>, vector<1x8x16xf32>
    tpu.vector_store %arg20[%c0_115, %c0_116, %c0_117], %206 {strides = array<i32>} : memref<1x8x32xf32, #tpu.memory_space<vmem>>, vector<1x8x16xf32>,
    %208 = vector.extract_strided_slice %182 {offsets = [0, 0, 16], sizes = [1, 8, 16], strides = [1, 1, 1]} : vector<1x8x32xbf16> to vector<1x8x16xbf16>
    %209 = vector.extract_strided_slice %184 {offsets = [0, 0, 16], sizes = [1, 8, 16], strides = [1, 1, 1]} : vector<1x8x32xbf16> to vector<1x8x16xbf16>
    "tpu.trace_start"() <{level = 10 : i32, message = "bqd,bkd->bqk"}> : () -> ()
    %cst_118 = arith.constant dense<0.000000e+00> : vector<1x8x8xf32>
    %210 = tpu.matmul %208, %209, %cst_118 {dimension_numbers = #tpu.dot_dimension_numbers<[2], [2], [1], [1], [0, 0, 0, 1, 1, 1], [0], [0]>} : vector<1x8x16xbf16>, vector<1x8x16xbf16>, vector<1x8x8xf32> -> vector<1x8x8xf32>
    "tpu.trace_stop"() : () -> ()
    %cst_119 = arith.constant 2.500000e-01 : f32
    %211 = vector.broadcast %cst_119 : f32 to vector<1x8x8xf32>
    %212 = arith.mulf %210, %211 : vector<1x8x8xf32>
    %213 = vector.shape_cast %0 : vector<8x8xf32> to vector<1x8x8xf32>
    %214 = arith.addf %212, %213 : vector<1x8x8xf32>
    %cst_120 = arith.constant dense<0xFF800000> : vector<1x8xf32>
    %215 = vector.multi_reduction <maximumf>, %214, %cst_120 [2] : vector<1x8x8xf32> to vector<1x8xf32>
    %216 = vector.shape_cast %215 : vector<1x8xf32> to vector<1x8x1xf32>
    %217 = vector.broadcast %216 : vector<1x8x1xf32> to vector<1x8x8xf32>
    %218 = arith.subf %214, %217 : vector<1x8x8xf32>
    %219 = math.exp %218 : vector<1x8x8xf32>
    %cst_121 = arith.constant dense<0.000000e+00> : vector<1x8xf32>
    %220 = vector.multi_reduction <add>, %219, %cst_121 [2] : vector<1x8x8xf32> to vector<1x8xf32>
    %221 = vector.shape_cast %220 : vector<1x8xf32> to vector<1x8x1xf32>
    %222 = tpu.reciprocal %221 {approx = true} : vector<1x8x1xf32> -> vector<1x8x1xf32>
    %223 = vector.broadcast %222 : vector<1x8x1xf32> to vector<1x8x8xf32>
    %224 = arith.mulf %219, %223 : vector<1x8x8xf32>
    %225 = arith.truncf %224 : vector<1x8x8xf32> to vector<1x8x8xbf16>
    %226 = vector.extract_strided_slice %186 {offsets = [0, 0, 16], sizes = [1, 8, 16], strides = [1, 1, 1]} : vector<1x8x32xbf16> to vector<1x8x16xbf16>
    "tpu.trace_start"() <{level = 10 : i32, message = "bqk,bkd->bqd"}> : () -> ()
    %cst_122 = arith.constant dense<0.000000e+00> : vector<1x8x16xf32>
    %227 = tpu.matmul %225, %226, %cst_122 {dimension_numbers = #tpu.dot_dimension_numbers<[2], [1], [1], [2], [0, 0, 0, 1, 1, 2], [0], [0]>} : vector<1x8x8xbf16>, vector<1x8x16xbf16>, vector<1x8x16xf32> -> vector<1x8x16xf32>
    "tpu.trace_stop"() : () -> ()
    %c0_123 = arith.constant 0 : index
    %c0_124 = arith.constant 0 : index
    %c16_125 = arith.constant 16 : index
    %228 = vector.load %arg20[%c0_123, %c0_124, %c16_125] : memref<1x8x32xf32, #tpu.memory_space<vmem>>, vector<1x8x16xf32>
    tpu.vector_store %arg20[%c0_123, %c0_124, %c16_125], %227 {strides = array<i32>} : memref<1x8x32xf32, #tpu.memory_space<vmem>>, vector<1x8x16xf32>,
    %c0_126 = arith.constant 0 : index
    %c0_127 = arith.constant 0 : index
    %c0_128 = arith.constant 0 : index
    %229 = vector.load %arg20[%c0_126, %c0_127, %c0_128] : memref<1x8x32xf32, #tpu.memory_space<vmem>>, vector<1x8x32xf32>
    %230 = vector.shape_cast %229 : vector<1x8x32xf32> to vector<8x32xf32>
    %231 = arith.truncf %230 : vector<8x32xf32> to vector<8x32xbf16>
    %c1_129 = arith.constant 1 : index
    %c0_130 = arith.constant 0 : index
    %c0_131 = arith.constant 0 : index
    %232 = vector.load %arg9[%c1_129, %c0_130, %c0_131] : memref<2x32x32xbf16, #tpu.memory_space<vmem>>, vector<1x32x32xbf16>
    %233 = vector.shape_cast %232 : vector<1x32x32xbf16> to vector<32x32xbf16>
    %cst_132 = arith.constant dense<0.000000e+00> : vector<8x32xf32>
    %234 = tpu.matmul %231, %233, %cst_132 {dimension_numbers = #tpu.dot_dimension_numbers<[1], [0], [0], [1], [0, 0, 1, 1], [], []>} : vector<8x32xbf16>, vector<32x32xbf16>, vector<8x32xf32> -> vector<8x32xf32>
    %c1_133 = arith.constant 1 : index
    %c0_134 = arith.constant 0 : index
    %c0_135 = arith.constant 0 : index
    %235 = vector.load %arg10[%c1_133, %c0_134, %c0_135] : memref<2x1x32xf32, #tpu.memory_space<vmem>>, vector<1x1x32xf32>
    %236 = vector.shape_cast %235 : vector<1x1x32xf32> to vector<1x32xf32>
    %237 = vector.broadcast %236 : vector<1x32xf32> to vector<8x32xf32>
    %238 = arith.addf %234, %237 : vector<8x32xf32>
    %239 = arith.addf %238, %154 : vector<8x32xf32>
    %c1_136 = arith.constant 1 : index
    %c0_137 = arith.constant 0 : index
    %c0_138 = arith.constant 0 : index
    %240 = vector.load %arg11[%c1_136, %c0_137, %c0_138] : memref<2x1x32xf32, #tpu.memory_space<vmem>>, vector<1x1x32xf32>
    %241 = vector.shape_cast %240 : vector<1x1x32xf32> to vector<1x32xf32>
    %c1_139 = arith.constant 1 : index
    %c0_140 = arith.constant 0 : index
    %c0_141 = arith.constant 0 : index
    %242 = vector.load %arg12[%c1_139, %c0_140, %c0_141] : memref<2x1x32xf32, #tpu.memory_space<vmem>>, vector<1x1x32xf32>
    %243 = vector.shape_cast %242 : vector<1x1x32xf32> to vector<1x32xf32>
    %cst_142 = arith.constant dense<0.000000e+00> : vector<8xf32>
    %244 = vector.multi_reduction <add>, %239, %cst_142 [1] : vector<8x32xf32> to vector<8xf32>
    %245 = vector.shape_cast %244 : vector<8xf32> to vector<8x1xf32>
    %cst_143 = arith.constant 3.200000e+01 : f32
    %246 = vector.broadcast %cst_143 : f32 to vector<8x1xf32>
    %247 = arith.divf %245, %246 : vector<8x1xf32>
    %248 = vector.broadcast %247 : vector<8x1xf32> to vector<8x32xf32>
    %249 = arith.subf %239, %248 : vector<8x32xf32>
    %250 = arith.mulf %249, %249 : vector<8x32xf32>
    %cst_144 = arith.constant dense<0.000000e+00> : vector<8xf32>
    %251 = vector.multi_reduction <add>, %250, %cst_144 [1] : vector<8x32xf32> to vector<8xf32>
    %252 = vector.shape_cast %251 : vector<8xf32> to vector<8x1xf32>
    %cst_145 = arith.constant 3.200000e+01 : f32
    %253 = vector.broadcast %cst_145 : f32 to vector<8x1xf32>
    %254 = arith.divf %252, %253 : vector<8x1xf32>
    %255 = vector.broadcast %247 : vector<8x1xf32> to vector<8x32xf32>
    %256 = arith.subf %239, %255 : vector<8x32xf32>
    %cst_146 = arith.constant 9.99999996E-13 : f32
    %257 = vector.broadcast %cst_146 : f32 to vector<8x1xf32>
    %258 = arith.addf %254, %257 : vector<8x1xf32>
    %259 = math.sqrt %258 : vector<8x1xf32>
    %260 = vector.broadcast %259 : vector<8x1xf32> to vector<8x32xf32>
    %261 = arith.divf %256, %260 : vector<8x32xf32>
    %262 = vector.broadcast %241 : vector<1x32xf32> to vector<8x32xf32>
    %263 = arith.mulf %262, %261 : vector<8x32xf32>
    %264 = vector.broadcast %243 : vector<1x32xf32> to vector<8x32xf32>
    %265 = arith.addf %263, %264 : vector<8x32xf32>
    %266 = arith.truncf %265 : vector<8x32xf32> to vector<8x32xbf16>
    %c1_147 = arith.constant 1 : index
    %c0_148 = arith.constant 0 : index
    %c0_149 = arith.constant 0 : index
    %267 = vector.load %arg13[%c1_147, %c0_148, %c0_149] : memref<2x32x128xbf16, #tpu.memory_space<vmem>>, vector<1x32x128xbf16>
    %268 = vector.shape_cast %267 : vector<1x32x128xbf16> to vector<32x128xbf16>
    %cst_150 = arith.constant dense<0.000000e+00> : vector<8x128xf32>
    %269 = tpu.matmul %266, %268, %cst_150 {dimension_numbers = #tpu.dot_dimension_numbers<[1], [0], [0], [1], [0, 0, 1, 1], [], []>} : vector<8x32xbf16>, vector<32x128xbf16>, vector<8x128xf32> -> vector<8x128xf32>
    %c1_151 = arith.constant 1 : index
    %c0_152 = arith.constant 0 : index
    %c0_153 = arith.constant 0 : index
    %270 = vector.load %arg14[%c1_151, %c0_152, %c0_153] : memref<2x1x128xf32, #tpu.memory_space<vmem>>, vector<1x1x128xf32>
    %271 = vector.shape_cast %270 : vector<1x1x128xf32> to vector<1x128xf32>
    %272 = vector.broadcast %271 : vector<1x128xf32> to vector<8x128xf32>
    %273 = arith.addf %269, %272 : vector<8x128xf32>
    %cst_154 = arith.constant 0.000000e+00 : f32
    %274 = vector.broadcast %cst_154 : f32 to vector<8x128xf32>
    %275 = arith.maximumf %273, %274 : vector<8x128xf32>
    %276 = arith.truncf %275 : vector<8x128xf32> to vector<8x128xbf16>
    %c1_155 = arith.constant 1 : index
    %c0_156 = arith.constant 0 : index
    %c0_157 = arith.constant 0 : index
    %277 = vector.load %arg15[%c1_155, %c0_156, %c0_157] : memref<2x128x32xbf16, #tpu.memory_space<vmem>>, vector<1x128x32xbf16>
    %278 = vector.shape_cast %277 : vector<1x128x32xbf16> to vector<128x32xbf16>
    %cst_158 = arith.constant dense<0.000000e+00> : vector<8x32xf32>
    %279 = tpu.matmul %276, %278, %cst_158 {dimension_numbers = #tpu.dot_dimension_numbers<[1], [0], [0], [1], [0, 0, 1, 1], [], []>} : vector<8x128xbf16>, vector<128x32xbf16>, vector<8x32xf32> -> vector<8x32xf32>
    %c1_159 = arith.constant 1 : index
    %c0_160 = arith.constant 0 : index
    %c0_161 = arith.constant 0 : index
    %280 = vector.load %arg16[%c1_159, %c0_160, %c0_161] : memref<2x1x32xf32, #tpu.memory_space<vmem>>, vector<1x1x32xf32>
    %281 = vector.shape_cast %280 : vector<1x1x32xf32> to vector<1x32xf32>
    %282 = vector.broadcast %281 : vector<1x32xf32> to vector<8x32xf32>
    %283 = arith.addf %279, %282 : vector<8x32xf32>
    %284 = arith.addf %283, %265 : vector<8x32xf32>
    %c1_162 = arith.constant 1 : index
    %c0_163 = arith.constant 0 : index
    %c0_164 = arith.constant 0 : index
    %285 = vector.load %arg17[%c1_162, %c0_163, %c0_164] : memref<2x1x32xf32, #tpu.memory_space<vmem>>, vector<1x1x32xf32>
    %286 = vector.shape_cast %285 : vector<1x1x32xf32> to vector<1x32xf32>
    %c1_165 = arith.constant 1 : index
    %c0_166 = arith.constant 0 : index
    %c0_167 = arith.constant 0 : index
    %287 = vector.load %arg18[%c1_165, %c0_166, %c0_167] : memref<2x1x32xf32, #tpu.memory_space<vmem>>, vector<1x1x32xf32>
    %288 = vector.shape_cast %287 : vector<1x1x32xf32> to vector<1x32xf32>
    %cst_168 = arith.constant dense<0.000000e+00> : vector<8xf32>
    %289 = vector.multi_reduction <add>, %284, %cst_168 [1] : vector<8x32xf32> to vector<8xf32>
    %290 = vector.shape_cast %289 : vector<8xf32> to vector<8x1xf32>
    %cst_169 = arith.constant 3.200000e+01 : f32
    %291 = vector.broadcast %cst_169 : f32 to vector<8x1xf32>
    %292 = arith.divf %290, %291 : vector<8x1xf32>
    %293 = vector.broadcast %292 : vector<8x1xf32> to vector<8x32xf32>
    %294 = arith.subf %284, %293 : vector<8x32xf32>
    %295 = arith.mulf %294, %294 : vector<8x32xf32>
    %cst_170 = arith.constant dense<0.000000e+00> : vector<8xf32>
    %296 = vector.multi_reduction <add>, %295, %cst_170 [1] : vector<8x32xf32> to vector<8xf32>
    %297 = vector.shape_cast %296 : vector<8xf32> to vector<8x1xf32>
    %cst_171 = arith.constant 3.200000e+01 : f32
    %298 = vector.broadcast %cst_171 : f32 to vector<8x1xf32>
    %299 = arith.divf %297, %298 : vector<8x1xf32>
    %300 = vector.broadcast %292 : vector<8x1xf32> to vector<8x32xf32>
    %301 = arith.subf %284, %300 : vector<8x32xf32>
    %cst_172 = arith.constant 9.99999996E-13 : f32
    %302 = vector.broadcast %cst_172 : f32 to vector<8x1xf32>
    %303 = arith.addf %299, %302 : vector<8x1xf32>
    %304 = math.sqrt %303 : vector<8x1xf32>
    %305 = vector.broadcast %304 : vector<8x1xf32> to vector<8x32xf32>
    %306 = arith.divf %301, %305 : vector<8x32xf32>
    %307 = vector.broadcast %286 : vector<1x32xf32> to vector<8x32xf32>
    %308 = arith.mulf %307, %306 : vector<8x32xf32>
    %309 = vector.broadcast %288 : vector<1x32xf32> to vector<8x32xf32>
    %310 = arith.addf %308, %309 : vector<8x32xf32>
    %311 = vector.shape_cast %310 : vector<8x32xf32> to vector<1x8x32xf32>
    %c1_173 = arith.constant 1 : index
    %c0_174 = arith.constant 0 : index
    %c0_175 = arith.constant 0 : index
    %c0_176 = arith.constant 0 : index
    %312 = vector.load %arg19[%c1_173, %c0_174, %c0_175, %c0_176] : memref<2x1x8x32xf32, #tpu.memory_space<vmem>>, vector<1x1x8x32xf32>
    %313 = vector.shape_cast %312 : vector<1x1x8x32xf32> to vector<1x8x32xf32>
    %314 = vector.shape_cast %311 : vector<1x8x32xf32> to vector<1x1x8x32xf32>
    tpu.vector_store %arg19[%c1_173, %c0_174, %c0_175, %c0_176], %314 {strides = array<i32>} : memref<2x1x8x32xf32, #tpu.memory_space<vmem>>, vector<1x1x8x32xf32>,
    return
  }
  func.func @transform_0(%arg0: i32) -> (i32, i32, i32) {
    %c0_i32 = arith.constant 0 : i32
    %c0_i32_0 = arith.constant 0 : i32
    %c0_i32_1 = arith.constant 0 : i32
    return %arg0, %c0_i32, %c0_i32_0 : i32, i32, i32
  }
  func.func @transform_1(%arg0: i32) -> (i32, i32) {
    %c0_i32 = arith.constant 0 : i32
    %c0_i32_0 = arith.constant 0 : i32
    %c0_i32_1 = arith.constant 0 : i32
    return %c0_i32, %c0_i32_0 : i32, i32
  }
  func.func @transform_2(%arg0: i32) -> (i32, i32, i32) {
    %c0_i32 = arith.constant 0 : i32
    %c0_i32_0 = arith.constant 0 : i32
    %c0_i32_1 = arith.constant 0 : i32
    %c0_i32_2 = arith.constant 0 : i32
    return %c0_i32, %c0_i32_0, %c0_i32_1 : i32, i32, i32
  }
  func.func @transform_3(%arg0: i32) -> (i32, i32, i32) {
    %c0_i32 = arith.constant 0 : i32
    %c0_i32_0 = arith.constant 0 : i32
    %c0_i32_1 = arith.constant 0 : i32
    %c0_i32_2 = arith.constant 0 : i32
    return %c0_i32, %c0_i32_0, %c0_i32_1 : i32, i32, i32
  }
  func.func @transform_4(%arg0: i32) -> (i32, i32, i32) {
    %c0_i32 = arith.constant 0 : i32
    %c0_i32_0 = arith.constant 0 : i32
    %c0_i32_1 = arith.constant 0 : i32
    %c0_i32_2 = arith.constant 0 : i32
    return %c0_i32, %c0_i32_0, %c0_i32_1 : i32, i32, i32
  }
  func.func @transform_5(%arg0: i32) -> (i32, i32, i32) {
    %c0_i32 = arith.constant 0 : i32
    %c0_i32_0 = arith.constant 0 : i32
    %c0_i32_1 = arith.constant 0 : i32
    %c0_i32_2 = arith.constant 0 : i32
    return %c0_i32, %c0_i32_0, %c0_i32_1 : i32, i32, i32
  }
  func.func @transform_6(%arg0: i32) -> (i32, i32, i32) {
    %c0_i32 = arith.constant 0 : i32
    %c0_i32_0 = arith.constant 0 : i32
    %c0_i32_1 = arith.constant 0 : i32
    %c0_i32_2 = arith.constant 0 : i32
    return %c0_i32, %c0_i32_0, %c0_i32_1 : i32, i32, i32
  }
  func.func @transform_7(%arg0: i32) -> (i32, i32, i32) {
    %c0_i32 = arith.constant 0 : i32
    %c0_i32_0 = arith.constant 0 : i32
    %c0_i32_1 = arith.constant 0 : i32
    %c0_i32_2 = arith.constant 0 : i32
    return %c0_i32, %c0_i32_0, %c0_i32_1 : i32, i32, i32
  }
  func.func @transform_8(%arg0: i32) -> (i32, i32, i32) {
    %c0_i32 = arith.constant 0 : i32
    %c0_i32_0 = arith.constant 0 : i32
    %c0_i32_1 = arith.constant 0 : i32
    %c0_i32_2 = arith.constant 0 : i32
    return %c0_i32, %c0_i32_0, %c0_i32_1 : i32, i32, i32
  }
  func.func @transform_9(%arg0: i32) -> (i32, i32, i32) {
    %c0_i32 = arith.constant 0 : i32
    %c0_i32_0 = arith.constant 0 : i32
    %c0_i32_1 = arith.constant 0 : i32
    %c0_i32_2 = arith.constant 0 : i32
    return %c0_i32, %c0_i32_0, %c0_i32_1 : i32, i32, i32
  }
  func.func @transform_10(%arg0: i32) -> (i32, i32, i32) {
    %c0_i32 = arith.constant 0 : i32
    %c0_i32_0 = arith.constant 0 : i32
    %c0_i32_1 = arith.constant 0 : i32
    %c0_i32_2 = arith.constant 0 : i32
    return %c0_i32, %c0_i32_0, %c0_i32_1 : i32, i32, i32
  }
  func.func @transform_11(%arg0: i32) -> (i32, i32, i32) {
    %c0_i32 = arith.constant 0 : i32
    %c0_i32_0 = arith.constant 0 : i32
    %c0_i32_1 = arith.constant 0 : i32
    %c0_i32_2 = arith.constant 0 : i32
    return %c0_i32, %c0_i32_0, %c0_i32_1 : i32, i32, i32
  }
  func.func @transform_12(%arg0: i32) -> (i32, i32, i32) {
    %c0_i32 = arith.constant 0 : i32
    %c0_i32_0 = arith.constant 0 : i32
    %c0_i32_1 = arith.constant 0 : i32
    %c0_i32_2 = arith.constant 0 : i32
    return %c0_i32, %c0_i32_0, %c0_i32_1 : i32, i32, i32
  }
  func.func @transform_13(%arg0: i32) -> (i32, i32, i32) {
    %c0_i32 = arith.constant 0 : i32
    %c0_i32_0 = arith.constant 0 : i32
    %c0_i32_1 = arith.constant 0 : i32
    %c0_i32_2 = arith.constant 0 : i32
    return %c0_i32, %c0_i32_0, %c0_i32_1 : i32, i32, i32
  }
  func.func @transform_14(%arg0: i32) -> (i32, i32, i32) {
    %c0_i32 = arith.constant 0 : i32
    %c0_i32_0 = arith.constant 0 : i32
    %c0_i32_1 = arith.constant 0 : i32
    %c0_i32_2 = arith.constant 0 : i32
    return %c0_i32, %c0_i32_0, %c0_i32_1 : i32, i32, i32
  }
  func.func @transform_15(%arg0: i32) -> (i32, i32, i32) {
    %c0_i32 = arith.constant 0 : i32
    %c0_i32_0 = arith.constant 0 : i32
    %c0_i32_1 = arith.constant 0 : i32
    %c0_i32_2 = arith.constant 0 : i32
    return %c0_i32, %c0_i32_0, %c0_i32_1 : i32, i32, i32
  }
  func.func @transform_16(%arg0: i32) -> (i32, i32, i32) {
    %c0_i32 = arith.constant 0 : i32
    %c0_i32_0 = arith.constant 0 : i32
    %c0_i32_1 = arith.constant 0 : i32
    %c0_i32_2 = arith.constant 0 : i32
    return %c0_i32, %c0_i32_0, %c0_i32_1 : i32, i32, i32
  }
  func.func @transform_17(%arg0: i32) -> (i32, i32, i32) {
    %c0_i32 = arith.constant 0 : i32
    %c0_i32_0 = arith.constant 0 : i32
    %c0_i32_1 = arith.constant 0 : i32
    %c0_i32_2 = arith.constant 0 : i32
    return %c0_i32, %c0_i32_0, %c0_i32_1 : i32, i32, i32
  }
  func.func @transform_18(%arg0: i32) -> (i32, i32, i32, i32) {
    %c0_i32 = arith.constant 0 : i32
    %c0_i32_0 = arith.constant 0 : i32
    %c0_i32_1 = arith.constant 0 : i32
    %c0_i32_2 = arith.constant 0 : i32
    return %c0_i32, %arg0, %c0_i32_0, %c0_i32_1 : i32, i32, i32, i32
  }
}

</mosaic_0001>

<llo_original>
// kernel: tpu_custom_call.1
$region0: #{tpu_custom_call.1}
  #allocation0 [shape = 'u32[]', space=smem, size = 0x4, offset = 0x4, fixed_abs, tag = 'smem constant byte address 0x4 - core index']
  #allocation1 [shape = 'u32[72,128]{1,0:T(1,128)}', space=vmem, size = 0x9000, scoped, tag = 'internal scratch']
  #allocation2 [shape = 'f32[1,8,32]{2,1,0:T(8,128)}', space=vmem, size = 0x1000, scoped, tag = 'scratch operand']
  %s0 = inlined_call_operand.hbm [shape: f32[2,8,32], index: 0, kind: input, shape index: {}]
  %s1 = inlined_call_operand.hbm [shape: f32[8,8], index: 1, kind: input, shape index: {}]
  %s2 = inlined_call_operand.vmem [shape: bf16[2,32,32], index: 2, kind: input, shape index: {}]
  %s3 = inlined_call_operand.hbm [shape: f32[2,1,32], index: 3, kind: input, shape index: {}]
  %s4 = inlined_call_operand.vmem [shape: bf16[2,32,32], index: 4, kind: input, shape index: {}]
  %s5 = inlined_call_operand.vmem [shape: f32[2,1,32], index: 5, kind: input, shape index: {}]
  %s6 = inlined_call_operand.vmem [shape: bf16[2,32,32], index: 6, kind: input, shape index: {}]
  %s7 = inlined_call_operand.vmem [shape: f32[2,1,32], index: 7, kind: input, shape index: {}]
  %s8 = inlined_call_operand.vmem [shape: bf16[2,32,32], index: 8, kind: input, shape index: {}]
  %s9 = inlined_call_operand.vmem [shape: f32[2,1,32], index: 9, kind: input, shape index: {}]
  %s10 = inlined_call_operand.vmem [shape: f32[2,1,32], index: 10, kind: input, shape index: {}]
  %s11 = inlined_call_operand.hbm [shape: f32[2,1,32], index: 11, kind: input, shape index: {}]
  %s12 = inlined_call_operand.vmem [shape: bf16[2,32,128], index: 12, kind: input, shape index: {}]
  %s13 = inlined_call_operand.vmem [shape: f32[2,1,128], index: 13, kind: input, shape index: {}]
  %s14 = inlined_call_operand.vmem [shape: bf16[2,128,32], index: 14, kind: input, shape index: {}]
  %s15 = inlined_call_operand.vmem [shape: f32[2,1,32], index: 15, kind: input, shape index: {}]
  %s16 = inlined_call_operand.vmem [shape: f32[2,1,32], index: 16, kind: input, shape index: {}]
  %s17 = inlined_call_operand.hbm [shape: f32[2,1,32], index: 17, kind: input, shape index: {}]
  %s18 = inlined_call_operand.hbm [shape: f32[2,2,8,32], index: 18, kind: output, shape index: {}]
  %s19 = sld [smem:[#allocation0]]
  $region125: #{tpu_custom_call.1} parent=0
    _
  %s21 = ssub.s32 1, %s19
  %s22 = scalar_select 0, %s21, %s19
  $region1: #{tpu_custom_call.1} parent=0
    #allocation3 [shape = 'u8[8192]{0}', space=vmem, size = 0x2000, scoped, tag = 'input window, operand 0']
    #allocation4 [shape = 's32[2]{0}', space=sflag, size = 0x8, scoped, tag = 'scoped memory for tpu_custom_call.1']
    #allocation5 [shape = 's32[2]{0}', space=sflag, size = 0x8, scoped, tag = 'scoped memory for tpu_custom_call.1']
    #allocation6 [shape = 'u8[4096]{0}', space=vmem, size = 0x1000, scoped, tag = 'input window, operand 1, single buffered']
    #allocation7 [shape = 's32[1]{0}', space=sflag, size = 0x4, scoped, tag = 'scoped memory for tpu_custom_call.1']
    #allocation8 [shape = 'u8[1024]{0}', space=vmem, size = 0x400, scoped, tag = 'input window, operand 3, single buffered']
    #allocation9 [shape = 'u8[1024]{0}', space=vmem, size = 0x400, scoped, tag = 'input window, operand 11, single buffered']
    #allocation10 [shape = 's32[1]{0}', space=sflag, size = 0x4, scoped, tag = 'scoped memory for tpu_custom_call.1']
    #allocation11 [shape = 'u8[1024]{0}', space=vmem, size = 0x400, scoped, tag = 'input window, operand 17, single buffered']
    #allocation12 [shape = 'u8[16384]{0}', space=vmem, size = 0x4000, scoped, tag = 'output window, operand 0']
    %23 = vsyncpa [#allocation4], 0
    %s24 = scalar_lea.sflag [#allocation4], 1
    %25 = vsyncpa %s24, 0
    %26 = vsyncpa [#allocation7], 0
    %27 = vsyncpa [#allocation10], 0
    %28 = vsyncpa [#allocation5], 0
    %s29 = scalar_lea.sflag [#allocation5], 1
    %30 = vsyncpa %s29, 0
    loop: start=0, step=1, limit=4
    $region2: #{tpu_custom_call.1} parent=1 // loop_pre_header
      _
    $region3: #{tpu_custom_call.1} parent=1 // loop_header
      %s32 = sphi 0, %s36
      %p33 = scmp.ge.s32.totalorder %s32, 4
      %s42 = sphi 0, %s44
      %s45 = sphi 0, %s42
      %s46 = sphi 0, %s45
      %s62 = sphi 0, %s46
      %s66 = sphi 0, %s66
      %s68 = sphi 0, %s66
      %s69 = sphi 0, %s68
      %s83 = sphi 0, %s69
      %s87 = sphi 0, %s87
      %s89 = sphi 0, %s87
      %s90 = sphi 0, %s89
      %s104 = sphi 0, %s90
      %s108 = sphi 0, %s108
      %s110 = sphi 0, %s108
      %s111 = sphi 0, %s110
      %s125 = sphi 0, %s111
      %s129 = sphi 0, %s129
      %s131 = sphi 0, %s129
      %s132 = sphi 0, %s131
      %s146 = sphi 0, %s132
      %s150 = sphi 0, %s150
      %s152 = sphi 0, %s150
      %s153 = sphi 0, %s152
      %s167 = sphi 0, %s153
      %s171 = sphi 0, %s171
      %s173 = sphi 0, %s171
      %s174 = sphi 0, %s173
      %s188 = sphi 0, %s174
      %s192 = sphi 0, %s192
      %s194 = sphi 0, %s192
      %s195 = sphi 0, %s194
      %s209 = sphi 0, %s195
      %s213 = sphi 0, %s213
      %s215 = sphi 0, %s213
      %s216 = sphi 0, %s215
      %s230 = sphi 0, %s216
      %s234 = sphi 0, %s234
      %s236 = sphi 0, %s234
      %s237 = sphi 0, %s236
      %s251 = sphi 0, %s237
      %s255 = sphi 0, %s255
      %s257 = sphi 0, %s255
      %s258 = sphi 0, %s257
      %s272 = sphi 0, %s258
      %s276 = sphi 0, %s276
      %s278 = sphi 0, %s276
      %s279 = sphi 0, %s278
      %s293 = sphi 0, %s279
      %s297 = sphi 0, %s297
      %s299 = sphi 0, %s297
      %s300 = sphi 0, %s299
      %s314 = sphi 0, %s300
      %s318 = sphi 0, %s318
      %s320 = sphi 0, %s318
      %s321 = sphi 0, %s320
      %s335 = sphi 0, %s321
      %s339 = sphi 0, %s339
      %s341 = sphi 0, %s339
      %s342 = sphi 0, %s341
      %s356 = sphi 0, %s342
      %s360 = sphi 0, %s360
      %s362 = sphi 0, %s360
      %s363 = sphi 0, %s362
      %s377 = sphi 0, %s363
      %s381 = sphi 0, %s381
      %s383 = sphi 0, %s381
      %s384 = sphi 0, %s383
      %s398 = sphi 0, %s384
      %s402 = sphi 0, %s402
      %s404 = sphi 0, %s402
      %s405 = sphi 0, %s404
      %s419 = sphi 0, %s405
      %s425 = sphi 0, %s427
      %s428 = sphi 0, %s425
      %s429 = sphi 0, %s428
      %s445 = sphi 0, %s429
    $region4: #{tpu_custom_call.1} parent=1 // loop_header_branch
      %35 = sbr.rel (%p33) target = $region8
    $region5: #{tpu_custom_call.1} parent=1 // loop_body
      %s37 = ssub.s32 %s32, 1
      %s38 = ssub.s32 %s32, 2
      %s39 = sadd.s32 %s32, 1
      %s40 = ssub.s32 %s32, %s39
      %p41 = scmp.eq.s32.totalorder %s40, 0
      %s43 = sadd.s32 %s42, 1
      %s44 = scalar_select %p41, %s42, %s43
      %p47 = pneg %p41
      %p48 = scmp.eq.s32.totalorder %s32, 1
      %p49 = por %p47, %p48
      %p50 = scmp.ne.s32.totalorder %s42, %s45
      %p51 = scmp.eq.s32.totalorder %s32, 0
      %p52 = por %p50, %p51
      %p53 = scmp.ne.s32.totalorder %s42, %s45
      %p54 = scmp.eq.s32.totalorder %s37, 1
      %p55 = por %p53, %p54
      %p56 = scmp.ne.s32.totalorder %s45, %s46
      %p57 = scmp.eq.s32.totalorder %s37, 0
      %p58 = por %p56, %p57
      %p59 = scmp.ne.s32.totalorder %s45, %s46
      %p60 = scmp.eq.s32.totalorder %s38, 1
      %p61 = por %p59, %p60
      %p63 = scmp.ne.s32.totalorder %s46, %s62
      %p64 = scmp.eq.s32.totalorder %s38, 0
      %p65 = por %p63, %p64
      %s67 = sadd.s32 %s66, 1
      %p70 = scmp.eq.s32.totalorder %s32, 1
      %p71 = scmp.ne.s32.totalorder %s66, %s68
      %p72 = scmp.eq.s32.totalorder %s32, 0
      %p73 = por %p71, %p72
      %p74 = scmp.ne.s32.totalorder %s66, %s68
      %p75 = scmp.eq.s32.totalorder %s37, 1
      %p76 = por %p74, %p75
      %p77 = scmp.ne.s32.totalorder %s68, %s69
      %p78 = scmp.eq.s32.totalorder %s37, 0
      %p79 = por %p77, %p78
      %p80 = scmp.ne.s32.totalorder %s68, %s69
      %p81 = scmp.eq.s32.totalorder %s38, 1
      %p82 = por %p80, %p81
      %p84 = scmp.ne.s32.totalorder %s69, %s83
      %p85 = scmp.eq.s32.totalorder %s38, 0
      %p86 = por %p84, %p85
      %s88 = sadd.s32 %s87, 1
      %p91 = scmp.eq.s32.totalorder %s32, 1
      %p92 = scmp.ne.s32.totalorder %s87, %s89
      %p93 = scmp.eq.s32.totalorder %s32, 0
      %p94 = por %p92, %p93
      %p95 = scmp.ne.s32.totalorder %s87, %s89
      %p96 = scmp.eq.s32.totalorder %s37, 1
      %p97 = por %p95, %p96
      %p98 = scmp.ne.s32.totalorder %s89, %s90
      %p99 = scmp.eq.s32.totalorder %s37, 0
      %p100 = por %p98, %p99
      %p101 = scmp.ne.s32.totalorder %s89, %s90
      %p102 = scmp.eq.s32.totalorder %s38, 1
      %p103 = por %p101, %p102
      %p105 = scmp.ne.s32.totalorder %s90, %s104
      %p106 = scmp.eq.s32.totalorder %s38, 0
      %p107 = por %p105, %p106
      %s109 = sadd.s32 %s108, 1
      %p112 = scmp.eq.s32.totalorder %s32, 1
      %p113 = scmp.ne.s32.totalorder %s108, %s110
      %p114 = scmp.eq.s32.totalorder %s32, 0
      %p115 = por %p113, %p114
      %p116 = scmp.ne.s32.totalorder %s108, %s110
      %p117 = scmp.eq.s32.totalorder %s37, 1
      %p118 = por %p116, %p117
      %p119 = scmp.ne.s32.totalorder %s110, %s111
      %p120 = scmp.eq.s32.totalorder %s37, 0
      %p121 = por %p119, %p120
      %p122 = scmp.ne.s32.totalorder %s110, %s111
      %p123 = scmp.eq.s32.totalorder %s38, 1
      %p124 = por %p122, %p123
      %p126 = scmp.ne.s32.totalorder %s111, %s125
      %p127 = scmp.eq.s32.totalorder %s38, 0
      %p128 = por %p126, %p127
      %s130 = sadd.s32 %s129, 1
      %p133 = scmp.eq.s32.totalorder %s32, 1
      %p134 = scmp.ne.s32.totalorder %s129, %s131
      %p135 = scmp.eq.s32.totalorder %s32, 0
      %p136 = por %p134, %p135
      %p137 = scmp.ne.s32.totalorder %s129, %s131
      %p138 = scmp.eq.s32.totalorder %s37, 1
      %p139 = por %p137, %p138
      %p140 = scmp.ne.s32.totalorder %s131, %s132
      %p141 = scmp.eq.s32.totalorder %s37, 0
      %p142 = por %p140, %p141
      %p143 = scmp.ne.s32.totalorder %s131, %s132
      %p144 = scmp.eq.s32.totalorder %s38, 1
      %p145 = por %p143, %p144
      %p147 = scmp.ne.s32.totalorder %s132, %s146
      %p148 = scmp.eq.s32.totalorder %s38, 0
      %p149 = por %p147, %p148
      %s151 = sadd.s32 %s150, 1
      %p154 = scmp.eq.s32.totalorder %s32, 1
      %p155 = scmp.ne.s32.totalorder %s150, %s152
      %p156 = scmp.eq.s32.totalorder %s32, 0
      %p157 = por %p155, %p156
      %p158 = scmp.ne.s32.totalorder %s150, %s152
      %p159 = scmp.eq.s32.totalorder %s37, 1
      %p160 = por %p158, %p159
      %p161 = scmp.ne.s32.totalorder %s152, %s153
      %p162 = scmp.eq.s32.totalorder %s37, 0
      %p163 = por %p161, %p162
      %p164 = scmp.ne.s32.totalorder %s152, %s153
      %p165 = scmp.eq.s32.totalorder %s38, 1
      %p166 = por %p164, %p165
      %p168 = scmp.ne.s32.totalorder %s153, %s167
      %p169 = scmp.eq.s32.totalorder %s38, 0
      %p170 = por %p168, %p169
      %s172 = sadd.s32 %s171, 1
      %p175 = scmp.eq.s32.totalorder %s32, 1
      %p176 = scmp.ne.s32.totalorder %s171, %s173
      %p177 = scmp.eq.s32.totalorder %s32, 0
      %p178 = por %p176, %p177
      %p179 = scmp.ne.s32.totalorder %s171, %s173
      %p180 = scmp.eq.s32.totalorder %s37, 1
      %p181 = por %p179, %p180
      %p182 = scmp.ne.s32.totalorder %s173, %s174
      %p183 = scmp.eq.s32.totalorder %s37, 0
      %p184 = por %p182, %p183
      %p185 = scmp.ne.s32.totalorder %s173, %s174
      %p186 = scmp.eq.s32.totalorder %s38, 1
      %p187 = por %p185, %p186
      %p189 = scmp.ne.s32.totalorder %s174, %s188
      %p190 = scmp.eq.s32.totalorder %s38, 0
      %p191 = por %p189, %p190
      %s193 = sadd.s32 %s192, 1
      %p196 = scmp.eq.s32.totalorder %s32, 1
      %p197 = scmp.ne.s32.totalorder %s192, %s194
      %p198 = scmp.eq.s32.totalorder %s32, 0
      %p199 = por %p197, %p198
      %p200 = scmp.ne.s32.totalorder %s192, %s194
      %p201 = scmp.eq.s32.totalorder %s37, 1
      %p202 = por %p200, %p201
      %p203 = scmp.ne.s32.totalorder %s194, %s195
      %p204 = scmp.eq.s32.totalorder %s37, 0
      %p205 = por %p203, %p204
      %p206 = scmp.ne.s32.totalorder %s194, %s195
      %p207 = scmp.eq.s32.totalorder %s38, 1
      %p208 = por %p206, %p207
      %p210 = scmp.ne.s32.totalorder %s195, %s209
      %p211 = scmp.eq.s32.totalorder %s38, 0
      %p212 = por %p210, %p211
      %s214 = sadd.s32 %s213, 1
      %p217 = scmp.eq.s32.totalorder %s32, 1
      %p218 = scmp.ne.s32.totalorder %s213, %s215
      %p219 = scmp.eq.s32.totalorder %s32, 0
      %p220 = por %p218, %p219
      %p221 = scmp.ne.s32.totalorder %s213, %s215
      %p222 = scmp.eq.s32.totalorder %s37, 1
      %p223 = por %p221, %p222
      %p224 = scmp.ne.s32.totalorder %s215, %s216
      %p225 = scmp.eq.s32.totalorder %s37, 0
      %p226 = por %p224, %p225
      %p227 = scmp.ne.s32.totalorder %s215, %s216
      %p228 = scmp.eq.s32.totalorder %s38, 1
      %p229 = por %p227, %p228
      %p231 = scmp.ne.s32.totalorder %s216, %s230
      %p232 = scmp.eq.s32.totalorder %s38, 0
      %p233 = por %p231, %p232
      %s235 = sadd.s32 %s234, 1
      %p238 = scmp.eq.s32.totalorder %s32, 1
      %p239 = scmp.ne.s32.totalorder %s234, %s236
      %p240 = scmp.eq.s32.totalorder %s32, 0
      %p241 = por %p239, %p240
      %p242 = scmp.ne.s32.totalorder %s234, %s236
      %p243 = scmp.eq.s32.totalorder %s37, 1
      %p244 = por %p242, %p243
      %p245 = scmp.ne.s32.totalorder %s236, %s237
      %p246 = scmp.eq.s32.totalorder %s37, 0
      %p247 = por %p245, %p246
      %p248 = scmp.ne.s32.totalorder %s236, %s237
      %p249 = scmp.eq.s32.totalorder %s38, 1
      %p250 = por %p248, %p249
      %p252 = scmp.ne.s32.totalorder %s237, %s251
      %p253 = scmp.eq.s32.totalorder %s38, 0
      %p254 = por %p252, %p253
      %s256 = sadd.s32 %s255, 1
      %p259 = scmp.eq.s32.totalorder %s32, 1
      %p260 = scmp.ne.s32.totalorder %s255, %s257
      %p261 = scmp.eq.s32.totalorder %s32, 0
      %p262 = por %p260, %p261
      %p263 = scmp.ne.s32.totalorder %s255, %s257
      %p264 = scmp.eq.s32.totalorder %s37, 1
      %p265 = por %p263, %p264
      %p266 = scmp.ne.s32.totalorder %s257, %s258
      %p267 = scmp.eq.s32.totalorder %s37, 0
      %p268 = por %p266, %p267
      %p269 = scmp.ne.s32.totalorder %s257, %s258
      %p270 = scmp.eq.s32.totalorder %s38, 1
      %p271 = por %p269, %p270
      %p273 = scmp.ne.s32.totalorder %s258, %s272
      %p274 = scmp.eq.s32.totalorder %s38, 0
      %p275 = por %p273, %p274
      %s277 = sadd.s32 %s276, 1
      %p280 = scmp.eq.s32.totalorder %s32, 1
      %p281 = scmp.ne.s32.totalorder %s276, %s278
      %p282 = scmp.eq.s32.totalorder %s32, 0
      %p283 = por %p281, %p282
      %p284 = scmp.ne.s32.totalorder %s276, %s278
      %p285 = scmp.eq.s32.totalorder %s37, 1
      %p286 = por %p284, %p285
      %p287 = scmp.ne.s32.totalorder %s278, %s279
      %p288 = scmp.eq.s32.totalorder %s37, 0
      %p289 = por %p287, %p288
      %p290 = scmp.ne.s32.totalorder %s278, %s279
      %p291 = scmp.eq.s32.totalorder %s38, 1
      %p292 = por %p290, %p291
      %p294 = scmp.ne.s32.totalorder %s279, %s293
      %p295 = scmp.eq.s32.totalorder %s38, 0
      %p296 = por %p294, %p295
      %s298 = sadd.s32 %s297, 1
      %p301 = scmp.eq.s32.totalorder %s32, 1
      %p302 = scmp.ne.s32.totalorder %s297, %s299
      %p303 = scmp.eq.s32.totalorder %s32, 0
      %p304 = por %p302, %p303
      %p305 = scmp.ne.s32.totalorder %s297, %s299
      %p306 = scmp.eq.s32.totalorder %s37, 1
      %p307 = por %p305, %p306
      %p308 = scmp.ne.s32.totalorder %s299, %s300
      %p309 = scmp.eq.s32.totalorder %s37, 0
      %p310 = por %p308, %p309
      %p311 = scmp.ne.s32.totalorder %s299, %s300
      %p312 = scmp.eq.s32.totalorder %s38, 1
      %p313 = por %p311, %p312
      %p315 = scmp.ne.s32.totalorder %s300, %s314
      %p316 = scmp.eq.s32.totalorder %s38, 0
      %p317 = por %p315, %p316
      %s319 = sadd.s32 %s318, 1
      %p322 = scmp.eq.s32.totalorder %s32, 1
      %p323 = scmp.ne.s32.totalorder %s318, %s320
      %p324 = scmp.eq.s32.totalorder %s32, 0
      %p325 = por %p323, %p324
      %p326 = scmp.ne.s32.totalorder %s318, %s320
      %p327 = scmp.eq.s32.totalorder %s37, 1
      %p328 = por %p326, %p327
      %p329 = scmp.ne.s32.totalorder %s320, %s321
      %p330 = scmp.eq.s32.totalorder %s37, 0
      %p331 = por %p329, %p330
      %p332 = scmp.ne.s32.totalorder %s320, %s321
      %p333 = scmp.eq.s32.totalorder %s38, 1
      %p334 = por %p332, %p333
      %p336 = scmp.ne.s32.totalorder %s321, %s335
      %p337 = scmp.eq.s32.totalorder %s38, 0
      %p338 = por %p336, %p337
      %s340 = sadd.s32 %s339, 1
      %p343 = scmp.eq.s32.totalorder %s32, 1
      %p344 = scmp.ne.s32.totalorder %s339, %s341
      %p345 = scmp.eq.s32.totalorder %s32, 0
      %p346 = por %p344, %p345
      %p347 = scmp.ne.s32.totalorder %s339, %s341
      %p348 = scmp.eq.s32.totalorder %s37, 1
      %p349 = por %p347, %p348
      %p350 = scmp.ne.s32.totalorder %s341, %s342
      %p351 = scmp.eq.s32.totalorder %s37, 0
      %p352 = por %p350, %p351
      %p353 = scmp.ne.s32.totalorder %s341, %s342
      %p354 = scmp.eq.s32.totalorder %s38, 1
      %p355 = por %p353, %p354
      %p357 = scmp.ne.s32.totalorder %s342, %s356
      %p358 = scmp.eq.s32.totalorder %s38, 0
      %p359 = por %p357, %p358
      %s361 = sadd.s32 %s360, 1
      %p364 = scmp.eq.s32.totalorder %s32, 1
      %p365 = scmp.ne.s32.totalorder %s360, %s362
      %p366 = scmp.eq.s32.totalorder %s32, 0
      %p367 = por %p365, %p366
      %p368 = scmp.ne.s32.totalorder %s360, %s362
      %p369 = scmp.eq.s32.totalorder %s37, 1
      %p370 = por %p368, %p369
      %p371 = scmp.ne.s32.totalorder %s362, %s363
      %p372 = scmp.eq.s32.totalorder %s37, 0
      %p373 = por %p371, %p372
      %p374 = scmp.ne.s32.totalorder %s362, %s363
      %p375 = scmp.eq.s32.totalorder %s38, 1
      %p376 = por %p374, %p375
      %p378 = scmp.ne.s32.totalorder %s363, %s377
      %p379 = scmp.eq.s32.totalorder %s38, 0
      %p380 = por %p378, %p379
      %s382 = sadd.s32 %s381, 1
      %p385 = scmp.eq.s32.totalorder %s32, 1
      %p386 = scmp.ne.s32.totalorder %s381, %s383
      %p387 = scmp.eq.s32.totalorder %s32, 0
      %p388 = por %p386, %p387
      %p389 = scmp.ne.s32.totalorder %s381, %s383
      %p390 = scmp.eq.s32.totalorder %s37, 1
      %p391 = por %p389, %p390
      %p392 = scmp.ne.s32.totalorder %s383, %s384
      %p393 = scmp.eq.s32.totalorder %s37, 0
      %p394 = por %p392, %p393
      %p395 = scmp.ne.s32.totalorder %s383, %s384
      %p396 = scmp.eq.s32.totalorder %s38, 1
      %p397 = por %p395, %p396
      %p399 = scmp.ne.s32.totalorder %s384, %s398
      %p400 = scmp.eq.s32.totalorder %s38, 0
      %p401 = por %p399, %p400
      %s403 = sadd.s32 %s402, 1
      %p406 = scmp.eq.s32.totalorder %s32, 1
      %p407 = scmp.ne.s32.totalorder %s402, %s404
      %p408 = scmp.eq.s32.totalorder %s32, 0
      %p409 = por %p407, %p408
      %p410 = scmp.ne.s32.totalorder %s402, %s404
      %p411 = scmp.eq.s32.totalorder %s37, 1
      %p412 = por %p410, %p411
      %p413 = scmp.ne.s32.totalorder %s404, %s405
      %p414 = scmp.eq.s32.totalorder %s37, 0
      %p415 = por %p413, %p414
      %p416 = scmp.ne.s32.totalorder %s404, %s405
      %p417 = scmp.eq.s32.totalorder %s38, 1
      %p418 = por %p416, %p417
      %p420 = scmp.ne.s32.totalorder %s405, %s419
      %p421 = scmp.eq.s32.totalorder %s38, 0
      %p422 = por %p420, %p421
      %s423 = ssub.s32 %s32, %s39
      %p424 = scmp.eq.s32.totalorder %s423, 0
      %s426 = sadd.s32 %s425, 1
      %s427 = scalar_select %p424, %s425, %s426
      %p430 = pneg %p424
      %p431 = scmp.eq.s32.totalorder %s32, 1
      %p432 = por %p430, %p431
      %p433 = scmp.ne.s32.totalorder %s425, %s428
      %p434 = scmp.eq.s32.totalorder %s32, 0
      %p435 = por %p433, %p434
      %p436 = scmp.ne.s32.totalorder %s425, %s428
      %p437 = scmp.eq.s32.totalorder %s37, 1
      %p438 = por %p436, %p437
      %p439 = scmp.ne.s32.totalorder %s428, %s429
      %p440 = scmp.eq.s32.totalorder %s37, 0
      %p441 = por %p439, %p440
      %p442 = scmp.ne.s32.totalorder %s428, %s429
      %p443 = scmp.eq.s32.totalorder %s38, 1
      %p444 = por %p442, %p443
      %p446 = scmp.ne.s32.totalorder %s429, %s445
      %p447 = scmp.eq.s32.totalorder %s38, 0
      %p448 = por %p446, %p447
      %p449 = scmp.le.s32.totalorder 1, %s32
      %p450 = scmp.lt.s32.totalorder %s32, 3
      %p451 = pnand %p449, %p450
      %p452 = pneg %p451
      // Predicated region
      $region9: #{tpu_custom_call.1} parent=5 // pred_check
        _
      $region10: #{tpu_custom_call.1} parent=5 // pred_check_branch
        %454 = sbr.rel (%p451) target = $region12
      $region11: #{tpu_custom_call.1} parent=5 // pred_region
        %s455 = ssub.s32 %s32, 1
        // Predicated region
        $region13: #{tpu_custom_call.1} parent=11 // pred_check
          %p456 = pneg %p79
        $region14: #{tpu_custom_call.1} parent=11 // pred_check_branch
          %458 = sbr.rel (%p456) target = $region16
        $region15: #{tpu_custom_call.1} parent=11 // pred_region
          %460 = vsyncadd [#allocation7], 0
          %s462 = sshll.u32 %s1, 4
          %s463 = int_to_ptr.hbm [resolvable:$true] %s462
          %s464 = sshll.u32 [#allocation6], 4
          %s465 = int_to_ptr.vmem [resolvable:$true] %s464
          %467 = dma.hbm_to_vmem [thread:$0]  %s463, 128, %s465, [#allocation7]
        $region16: #{tpu_custom_call.1} parent=11 // pred_fallthru
          _
        // Predicated region
        $region17: #{tpu_custom_call.1} parent=11 // pred_check
          %p468 = pneg %p100
        $region18: #{tpu_custom_call.1} parent=11 // pred_check_branch
          %470 = sbr.rel (%p468) target = $region20
        $region19: #{tpu_custom_call.1} parent=11 // pred_region
          _
        $region20: #{tpu_custom_call.1} parent=11 // pred_fallthru
          _
        // Predicated region
        $region21: #{tpu_custom_call.1} parent=11 // pred_check
          %p471 = pneg %p121
        $region22: #{tpu_custom_call.1} parent=11 // pred_check_branch
          %473 = sbr.rel (%p471) target = $region24
        $region23: #{tpu_custom_call.1} parent=11 // pred_region
          %475 = vsyncadd [#allocation7], 0
          %s476 = sshll.u32 %s3, 4
          %s477 = int_to_ptr.hbm [resolvable:$true] %s476
          %s478 = sshll.u32 [#allocation8], 4
          %s479 = int_to_ptr.vmem [resolvable:$true] %s478
          %484 = dma.hbm_to_vmem [thread:$0]  %s477, 32, %s479, [#allocation7], 16, 16, 1
        $region24: #{tpu_custom_call.1} parent=11 // pred_fallthru
          _
        // Predicated region
        $region25: #{tpu_custom_call.1} parent=11 // pred_check
          %p485 = pneg %p142
        $region26: #{tpu_custom_call.1} parent=11 // pred_check_branch
          %487 = sbr.rel (%p485) target = $region28
        $region27: #{tpu_custom_call.1} parent=11 // pred_region
          _
        $region28: #{tpu_custom_call.1} parent=11 // pred_fallthru
          _
        // Predicated region
        $region29: #{tpu_custom_call.1} parent=11 // pred_check
          %p488 = pneg %p163
        $region30: #{tpu_custom_call.1} parent=11 // pred_check_branch
          %490 = sbr.rel (%p488) target = $region32
        $region31: #{tpu_custom_call.1} parent=11 // pred_region
          _
        $region32: #{tpu_custom_call.1} parent=11 // pred_fallthru
          _
        // Predicated region
        $region33: #{tpu_custom_call.1} parent=11 // pred_check
          %p491 = pneg %p184
        $region34: #{tpu_custom_call.1} parent=11 // pred_check_branch
          %493 = sbr.rel (%p491) target = $region36
        $region35: #{tpu_custom_call.1} parent=11 // pred_region
          _
        $region36: #{tpu_custom_call.1} parent=11 // pred_fallthru
          _
        // Predicated region
        $region37: #{tpu_custom_call.1} parent=11 // pred_check
          %p494 = pneg %p205
        $region38: #{tpu_custom_call.1} parent=11 // pred_check_branch
          %496 = sbr.rel (%p494) target = $region40
        $region39: #{tpu_custom_call.1} parent=11 // pred_region
          _
        $region40: #{tpu_custom_call.1} parent=11 // pred_fallthru
          _
        // Predicated region
        $region41: #{tpu_custom_call.1} parent=11 // pred_check
          %p497 = pneg %p226
        $region42: #{tpu_custom_call.1} parent=11 // pred_check_branch
          %499 = sbr.rel (%p497) target = $region44
        $region43: #{tpu_custom_call.1} parent=11 // pred_region
          _
        $region44: #{tpu_custom_call.1} parent=11 // pred_fallthru
          _
        // Predicated region
        $region45: #{tpu_custom_call.1} parent=11 // pred_check
          %p500 = pneg %p247
        $region46: #{tpu_custom_call.1} parent=11 // pred_check_branch
          %502 = sbr.rel (%p500) target = $region48
        $region47: #{tpu_custom_call.1} parent=11 // pred_region
          _
        $region48: #{tpu_custom_call.1} parent=11 // pred_fallthru
          _
        // Predicated region
        $region49: #{tpu_custom_call.1} parent=11 // pred_check
          %p503 = pneg %p268
        $region50: #{tpu_custom_call.1} parent=11 // pred_check_branch
          %505 = sbr.rel (%p503) target = $region52
        $region51: #{tpu_custom_call.1} parent=11 // pred_region
          _
        $region52: #{tpu_custom_call.1} parent=11 // pred_fallthru
          _
        // Predicated region
        $region53: #{tpu_custom_call.1} parent=11 // pred_check
          %p506 = pneg %p289
        $region54: #{tpu_custom_call.1} parent=11 // pred_check_branch
          %508 = sbr.rel (%p506) target = $region56
        $region55: #{tpu_custom_call.1} parent=11 // pred_region
          %510 = vsyncadd [#allocation10], 0
          %s511 = sshll.u32 %s11, 4
          %s512 = int_to_ptr.hbm [resolvable:$true] %s511
          %s513 = sshll.u32 [#allocation9], 4
          %s514 = int_to_ptr.vmem [resolvable:$true] %s513
          %519 = dma.hbm_to_vmem [thread:$0]  %s512, 32, %s514, [#allocation10], 16, 16, 1
        $region56: #{tpu_custom_call.1} parent=11 // pred_fallthru
          _
        // Predicated region
        $region57: #{tpu_custom_call.1} parent=11 // pred_check
          %p520 = pneg %p310
        $region58: #{tpu_custom_call.1} parent=11 // pred_check_branch
          %522 = sbr.rel (%p520) target = $region60
        $region59: #{tpu_custom_call.1} parent=11 // pred_region
          _
        $region60: #{tpu_custom_call.1} parent=11 // pred_fallthru
          _
        // Predicated region
        $region61: #{tpu_custom_call.1} parent=11 // pred_check
          %p523 = pneg %p331
        $region62: #{tpu_custom_call.1} parent=11 // pred_check_branch
          %525 = sbr.rel (%p523) target = $region64
        $region63: #{tpu_custom_call.1} parent=11 // pred_region
          _
        $region64: #{tpu_custom_call.1} parent=11 // pred_fallthru
          _
        // Predicated region
        $region65: #{tpu_custom_call.1} parent=11 // pred_check
          %p526 = pneg %p352
        $region66: #{tpu_custom_call.1} parent=11 // pred_check_branch
          %528 = sbr.rel (%p526) target = $region68
        $region67: #{tpu_custom_call.1} parent=11 // pred_region
          _
        $region68: #{tpu_custom_call.1} parent=11 // pred_fallthru
          _
        // Predicated region
        $region69: #{tpu_custom_call.1} parent=11 // pred_check
          %p529 = pneg %p373
        $region70: #{tpu_custom_call.1} parent=11 // pred_check_branch
          %531 = sbr.rel (%p529) target = $region72
        $region71: #{tpu_custom_call.1} parent=11 // pred_region
          _
        $region72: #{tpu_custom_call.1} parent=11 // pred_fallthru
          _
        // Predicated region
        $region73: #{tpu_custom_call.1} parent=11 // pred_check
          %p532 = pneg %p394
        $region74: #{tpu_custom_call.1} parent=11 // pred_check_branch
          %534 = sbr.rel (%p532) target = $region76
        $region75: #{tpu_custom_call.1} parent=11 // pred_region
          _
        $region76: #{tpu_custom_call.1} parent=11 // pred_fallthru
          _
        // Predicated region
        $region77: #{tpu_custom_call.1} parent=11 // pred_check
          %p535 = pneg %p415
        $region78: #{tpu_custom_call.1} parent=11 // pred_check_branch
          %537 = sbr.rel (%p535) target = $region80
        $region79: #{tpu_custom_call.1} parent=11 // pred_region
          %539 = vsyncadd [#allocation10], 0
          %s540 = sshll.u32 %s17, 4
          %s541 = int_to_ptr.hbm [resolvable:$true] %s540
          %s542 = sshll.u32 [#allocation11], 4
          %s543 = int_to_ptr.vmem [resolvable:$true] %s542
          %548 = dma.hbm_to_vmem [thread:$0]  %s541, 32, %s543, [#allocation10], 16, 16, 1
        $region80: #{tpu_custom_call.1} parent=11 // pred_fallthru
          _
      $region12: #{tpu_custom_call.1} parent=5 // pred_fallthru
        _
      %p549 = scmp.lt.s32.totalorder %s32, 2
      // Predicated region
      $region81: #{tpu_custom_call.1} parent=5 // pred_check
        %p550 = pneg %p549
      $region82: #{tpu_custom_call.1} parent=5 // pred_check_branch
        %552 = sbr.rel (%p550) target = $region84
      $region83: #{tpu_custom_call.1} parent=5 // pred_region
        // Predicated region
        $region85: #{tpu_custom_call.1} parent=83 // pred_check
          %p553 = pneg %p52
        $region86: #{tpu_custom_call.1} parent=83 // pred_check_branch
          %555 = sbr.rel (%p553) target = $region88
        $region87: #{tpu_custom_call.1} parent=83 // pred_region
          %s556 = sand.u32 %s42, 1
          %s557 = scalar_lea.sflag [#allocation4], %s556
          %s558 = sand.u32 %s42, 1
          %s559 = smul.addr %s558, 8
          %s560 = scalar_lea.vmem [#allocation3], %s559
          %562 = vsyncadd %s557, 0
          %s563 = smul.addr %s32, 8
          %s564 = scalar_lea.hbm %s0, %s563
          %s566 = sshll.u32 %s564, 4
          %s567 = int_to_ptr.hbm [resolvable:$true] %s566
          %s568 = sshll.u32 %s560, 4
          %s569 = int_to_ptr.vmem [resolvable:$true] %s568
          %571 = dma.hbm_to_vmem [thread:$0]  %s567, 128, %s569, %s557
        $region88: #{tpu_custom_call.1} parent=83 // pred_fallthru
          _
      $region84: #{tpu_custom_call.1} parent=5 // pred_fallthru
        _
      %p572 = scmp.le.s32.totalorder 1, %s32
      %p573 = scmp.lt.s32.totalorder %s32, 3
      %p574 = pnand %p572, %p573
      %p575 = pneg %p574
      // Predicated region
      $region89: #{tpu_custom_call.1} parent=5 // pred_check
        _
      $region90: #{tpu_custom_call.1} parent=5 // pred_check_branch
        %577 = sbr.rel (%p574) target = $region92
      $region91: #{tpu_custom_call.1} parent=5 // pred_region
        %s578 = ssub.s32 %s32, 1
        %s579 = sand.u32 %s45, 1
        %s580 = scalar_lea.sflag [#allocation4], %s579
        %s581 = sand.u32 %s45, 1
        %s582 = smul.addr %s581, 8
        %s583 = scalar_lea.vmem [#allocation3], %s582
        // Predicated region
        $region93: #{tpu_custom_call.1} parent=91 // pred_check
          %p584 = pneg %p58
        $region94: #{tpu_custom_call.1} parent=91 // pred_check_branch
          %586 = sbr.rel (%p584) target = $region96
        $region95: #{tpu_custom_call.1} parent=91 // pred_region
          %588 = dma.done %s580, 128
        $region96: #{tpu_custom_call.1} parent=91 // pred_fallthru
          _
        // Predicated region
        $region97: #{tpu_custom_call.1} parent=91 // pred_check
          %p589 = pneg %p79
        $region98: #{tpu_custom_call.1} parent=91 // pred_check_branch
          %591 = sbr.rel (%p589) target = $region100
        $region99: #{tpu_custom_call.1} parent=91 // pred_region
          %593 = dma.done [#allocation7], 128
        $region100: #{tpu_custom_call.1} parent=91 // pred_fallthru
          _
        // Predicated region
        $region101: #{tpu_custom_call.1} parent=91 // pred_check
          %p594 = pneg %p121
        $region102: #{tpu_custom_call.1} parent=91 // pred_check_branch
          %596 = sbr.rel (%p594) target = $region104
        $region103: #{tpu_custom_call.1} parent=91 // pred_region
          %598 = dma.done [#allocation7], 32
        $region104: #{tpu_custom_call.1} parent=91 // pred_fallthru
          _
        // Predicated region
        $region105: #{tpu_custom_call.1} parent=91 // pred_check
          %p599 = pneg %p289
        $region106: #{tpu_custom_call.1} parent=91 // pred_check_branch
          %601 = sbr.rel (%p599) target = $region108
        $region107: #{tpu_custom_call.1} parent=91 // pred_region
          %603 = dma.done [#allocation10], 32
        $region108: #{tpu_custom_call.1} parent=91 // pred_fallthru
          _
        // Predicated region
        $region109: #{tpu_custom_call.1} parent=91 // pred_check
          %p604 = pneg %p415
        $region110: #{tpu_custom_call.1} parent=91 // pred_check_branch
          %606 = sbr.rel (%p604) target = $region112
        $region111: #{tpu_custom_call.1} parent=91 // pred_region
          %608 = dma.done [#allocation10], 32
        $region112: #{tpu_custom_call.1} parent=91 // pred_fallthru
          _
        %s609 = sand.u32 %s45, 1
        %s610 = scalar_lea.sflag [#allocation4], %s609
        %s611 = sand.u32 %s45, 1
        %s612 = smul.addr %s611, 8
        %s613 = scalar_lea.vmem [#allocation3], %s612
        %p614 = pneg %p58
        %p615 = pneg %p55
        %p616 = pneg %p79
        %p617 = pneg %p76
        %p618 = pneg %p100
        %p619 = pneg %p97
        %p620 = pneg %p121
        %p621 = pneg %p118
        %p622 = pneg %p142
        %p623 = pneg %p139
        %p624 = pneg %p163
        %p625 = pneg %p160
        %p626 = pneg %p184
        %p627 = pneg %p181
        %p628 = pneg %p205
        %p629 = pneg %p202
        %p630 = pneg %p226
        %p631 = pneg %p223
        %p632 = pneg %p247
        %p633 = pneg %p244
        %p634 = pneg %p268
        %p635 = pneg %p265
        %p636 = pneg %p289
        %p637 = pneg %p286
        %p638 = pneg %p310
        %p639 = pneg %p307
        %p640 = pneg %p331
        %p641 = pneg %p328
        %p642 = pneg %p352
        %p643 = pneg %p349
        %p644 = pneg %p373
        %p645 = pneg %p370
        %p646 = pneg %p394
        %p647 = pneg %p391
        %p648 = pneg %p415
        %p649 = pneg %p412
        %p650 = pneg %p441
        %p651 = pneg %p438
        %s652 = sand.u32 %s428, 1
        %s653 = scalar_lea.sflag [#allocation5], %s652
        %s654 = sand.u32 %s428, 1
        %s655 = smul.addr %s654, 16
        %s656 = scalar_lea.vmem [#allocation12], %s655
        %v658 = vld [vmem:[#allocation6] sm:$0xff]
        %v659 = vld [vmem:[%s583] sm:$0xff]
        %v660 = vpack.c.bf16 %v659, %v659
        %v661 = vld [vmem:[%s2] sm:$0xf]
        %v662 = vld [vmem:[%s2 + $0x4] sm:$0xf]
        %v663 = vld [vmem:[%s2 + $0x8] sm:$0xf]
        %v664 = vld [vmem:[%s2 + $0xc] sm:$0xf]
        %v665 = vld [vmem:[#allocation8] sm:$0x1]
        %v667 = vperm.slane %v665, 0
        %v673 = vunpack.c.l.b16 %v661
        %v674 = vunpack.c.l.b16 %v662
        %v675 = vunpack.c.l.b16 %v663
        %v676 = vunpack.c.l.b16 %v664
        %v677 = vpack.c.b16 %v674, %v673
        %v678 = vpack.c.b16 %v676, %v675
        %vm681 = vcmask 261120
        %v683 = vsel %vm681, %v660, 0
        %685 = vmatpush.bf16.msra.mxu0 0
        %686 = vmatpush.bf16.msra.mxu0 0
        %687 = vmatpush.bf16.msra.mxu0 0
        %688 = vmatpush.bf16.msra.mxu0 0
        %689 = vmatpush.bf16.msra.mxu0 0
        %690 = vmatpush.bf16.msra.mxu0 0
        %691 = vmatpush.bf16.msra.mxu0 %v678
        %692 = vmatpush.bf16.msra.mxu0 %v677
        %693 = vmatmul.bf16.gmra.mxu0 %v683
        %v694 = vpop.f32.mrf.mxu0
        %v695 = vadd.f32 %v667, %v694
        %v696 = vpop.f32.mrf.mxu0
        %697 = vdwg.mxu0
        %v698 = vld [vmem:[%s4] sm:$0xf]
        %v699 = vld [vmem:[%s4 + $0x4] sm:$0xf]
        %v700 = vld [vmem:[%s4 + $0x8] sm:$0xf]
        %v701 = vld [vmem:[%s4 + $0xc] sm:$0xf]
        %v702 = vld [vmem:[%s5] sm:$0x1]
        %v704 = vperm.slane %v702, 0
        %v710 = vunpack.c.l.b16 %v698
        %v711 = vunpack.c.l.b16 %v699
        %v712 = vunpack.c.l.b16 %v700
        %v713 = vunpack.c.l.b16 %v701
        %v714 = vpack.c.b16 %v711, %v710
        %v715 = vpack.c.b16 %v713, %v712
        %718 = vmatpush.bf16.msra.mxu0 0
        %719 = vmatpush.bf16.msra.mxu0 0
        %720 = vmatpush.bf16.msra.mxu0 0
        %721 = vmatpush.bf16.msra.mxu0 0
        %722 = vmatpush.bf16.msra.mxu0 0
        %723 = vmatpush.bf16.msra.mxu0 0
        %724 = vmatpush.bf16.msra.mxu0 %v715
        %725 = vmatpush.bf16.msra.mxu0 %v714
        %726 = vmatmul.bf16.gmra.mxu0 %v683
        %v727 = vpop.f32.mrf.mxu0
        %v728 = vadd.f32 %v704, %v727
        %v729 = vpop.f32.mrf.mxu0
        %730 = vdwg.mxu0
        %v731 = vld [vmem:[%s6] sm:$0xf]
        %v732 = vld [vmem:[%s6 + $0x4] sm:$0xf]
        %v733 = vld [vmem:[%s6 + $0x8] sm:$0xf]
        %v734 = vld [vmem:[%s6 + $0xc] sm:$0xf]
        %v735 = vld [vmem:[%s7] sm:$0x1]
        %v737 = vperm.slane %v735, 0
        %v743 = vunpack.c.l.b16 %v731
        %v744 = vunpack.c.l.b16 %v732
        %v745 = vunpack.c.l.b16 %v733
        %v746 = vunpack.c.l.b16 %v734
        %v747 = vpack.c.b16 %v744, %v743
        %v748 = vpack.c.b16 %v746, %v745
        %751 = vmatpush.bf16.msra.mxu0 0
        %752 = vmatpush.bf16.msra.mxu0 0
        %753 = vmatpush.bf16.msra.mxu0 0
        %754 = vmatpush.bf16.msra.mxu0 0
        %755 = vmatpush.bf16.msra.mxu0 0
        %756 = vmatpush.bf16.msra.mxu0 0
        %757 = vmatpush.bf16.msra.mxu0 %v748
        %758 = vmatpush.bf16.msra.mxu0 %v747
        %759 = vmatmul.bf16.gmra.mxu0 %v683
        %v760 = vpop.f32.mrf.mxu0
        %v761 = vadd.f32 %v737, %v760
        %v762 = vpop.f32.mrf.mxu0
        %763 = vdwg.mxu0
        %v764 = vpack.c.bf16 %v695, %v695
        %v765 = vpack.c.bf16 %v728, %v728
        %v766 = vpack.c.bf16 %v761, %v761
        %vm767 = vcmask 130048
        %v769 = vsel %vm767, %v764, 0
        %v772 = vsel %vm767, %v765, 0
        %774 = vmatpush.bf16.xpose.msra.mxu0 0
        %775 = vmatpush.bf16.xpose.msra.mxu0 0
        %776 = vmatpush.bf16.xpose.msra.mxu0 0
        %777 = vmatpush.bf16.xpose.msra.mxu0 0
        %778 = vmatpush.bf16.xpose.msra.mxu0 0
        %779 = vmatpush.bf16.xpose.msra.mxu0 0
        %780 = vmatpush.bf16.xpose.msra.mxu0 0
        %781 = vmatpush.bf16.xpose.msra.mxu0 %v772
        %782 = vmatmul.bf16.gmra.mxu0 %v769
        %v783 = vpop.f32.mrf.mxu0
        %v784 = vadd.f32 0.0, %v783
        %v785 = vpop.f32.mrf.mxu0
        %786 = vdwg.mxu0
        %v787 = vmul.f32 %v784, 0.25
        %v788 = vadd.f32 %v787, %v658
        %vm789 = vcmask 64512
        %v790 = vsel %vm789, %v788, -inf
        %791 = vmax.xlane.f32.xlu0 %v790
        %v792 = vpop.xlane.xlu0 %791
        %v793 = vsub.f32 %v788, %v792
        %v794 = vmul.f32 %v793, 1.442695
        %v795 = vpow.pop %v794
        %v796 = vsel %vm789, %v795, 0.0
        %797 = vadd.xlane.f32.xlu0 %v796
        %v798 = vpop.xlane.xlu0 %797
        %v799 = vrcp.pop %v798
        %v800 = vmul.f32 %v795, %v799
        %v801 = vpack.c.bf16 %v800, %v800
        %v803 = vsel %vm789, %v801, 0
        %vm805 = vcmask 1043456
        %v807 = vsel %vm805, %v766, 0
        %809 = vmatpush.bf16.msra.mxu0 0
        %810 = vmatpush.bf16.msra.mxu0 0
        %811 = vmatpush.bf16.msra.mxu0 0
        %812 = vmatpush.bf16.msra.mxu0 0
        %813 = vmatpush.bf16.msra.mxu0 0
        %814 = vmatpush.bf16.msra.mxu0 0
        %815 = vmatpush.bf16.msra.mxu0 0
        %816 = vmatpush.bf16.msra.mxu0 %v807
        %817 = vmatmul.bf16.gmra.mxu0 %v803
        %v818 = vpop.f32.mrf.mxu0
        %v819 = vadd.f32 0.0, %v818
        %v820 = vpop.f32.mrf.mxu0
        %821 = vdwg.mxu0
        %822 = vst.msk [vmem:[#allocation2] sm:$0xff] %vm767, %v819
        %v824 = vunpack.c.l.b16 %v764
        %v825 = vpack.c.b16 %v824, %v824
        %826 = vrot.lane.b32.xlu0 %v825, 112
        %v827 = vpop.permute.xlu0 %826
        %v829 = vunpack.c.l.b16 %v765
        %v830 = vpack.c.b16 %v829, %v829
        %831 = vrot.lane.b32.xlu0 %v830, 112
        %v832 = vpop.permute.xlu0 %831
        %v834 = vsel %vm767, %v827, 0
        %v837 = vsel %vm767, %v832, 0
        %839 = vmatpush.bf16.xpose.msra.mxu0 0
        %840 = vmatpush.bf16.xpose.msra.mxu0 0
        %841 = vmatpush.bf16.xpose.msra.mxu0 0
        %842 = vmatpush.bf16.xpose.msra.mxu0 0
        %843 = vmatpush.bf16.xpose.msra.mxu0 0
        %844 = vmatpush.bf16.xpose.msra.mxu0 0
        %845 = vmatpush.bf16.xpose.msra.mxu0 0
        %846 = vmatpush.bf16.xpose.msra.mxu0 %v837
        %847 = vmatmul.bf16.gmra.mxu0 %v834
        %v848 = vpop.f32.mrf.mxu0
        %v849 = vadd.f32 0.0, %v848
        %v850 = vpop.f32.mrf.mxu0
        %851 = vdwg.mxu0
        %v852 = vmul.f32 %v849, 0.25
        %v853 = vadd.f32 %v852, %v658
        %v854 = vsel %vm789, %v853, -inf
        %855 = vmax.xlane.f32.xlu0 %v854
        %v856 = vpop.xlane.xlu0 %855
        %v857 = vsub.f32 %v853, %v856
        %v858 = vmul.f32 %v857, 1.442695
        %v859 = vpow.pop %v858
        %v860 = vsel %vm789, %v859, 0.0
        %861 = vadd.xlane.f32.xlu0 %v860
        %v862 = vpop.xlane.xlu0 %861
        %v863 = vrcp.pop %v862
        %v864 = vmul.f32 %v859, %v863
        %v865 = vpack.c.bf16 %v864, %v864
        %v867 = vunpack.c.l.b16 %v766
        %v868 = vpack.c.b16 %v867, %v867
        %869 = vrot.lane.b32.xlu0 %v868, 112
        %v870 = vpop.permute.xlu0 %869
        %v872 = vsel %vm789, %v865, 0
        %v875 = vsel %vm805, %v870, 0
        %877 = vmatpush.bf16.msra.mxu0 0
        %878 = vmatpush.bf16.msra.mxu0 0
        %879 = vmatpush.bf16.msra.mxu0 0
        %880 = vmatpush.bf16.msra.mxu0 0
        %881 = vmatpush.bf16.msra.mxu0 0
        %882 = vmatpush.bf16.msra.mxu0 0
        %883 = vmatpush.bf16.msra.mxu0 0
        %884 = vmatpush.bf16.msra.mxu0 %v875
        %885 = vmatmul.bf16.gmra.mxu0 %v872
        %v886 = vpop.f32.mrf.mxu0
        %v887 = vadd.f32 0.0, %v886
        %v888 = vpop.f32.mrf.mxu0
        %889 = vdwg.mxu0
        %891 = vrot.lane.b32.xlu0 %v887, 16
        %v892 = vpop.permute.xlu0 %891
        %vm894 = vcmask 261248
        %895 = vst.msk [vmem:[#allocation2] sm:$0xff] %vm894, %v892
        %v896 = vld [vmem:[#allocation2] sm:$0xff]
        %v897 = vpack.c.bf16 %v896, %v896
        %v898 = vld [vmem:[%s8] sm:$0xf]
        %v899 = vld [vmem:[%s8 + $0x4] sm:$0xf]
        %v900 = vld [vmem:[%s8 + $0x8] sm:$0xf]
        %v901 = vld [vmem:[%s8 + $0xc] sm:$0xf]
        %v902 = vld [vmem:[%s9] sm:$0x1]
        %v904 = vperm.slane %v902, 0
        %v910 = vunpack.c.l.b16 %v898
        %v911 = vunpack.c.l.b16 %v899
        %v912 = vunpack.c.l.b16 %v900
        %v913 = vunpack.c.l.b16 %v901
        %v914 = vpack.c.b16 %v911, %v910
        %v915 = vpack.c.b16 %v913, %v912
        %v919 = vsel %vm681, %v897, 0
        %921 = vmatpush.bf16.msra.mxu0 0
        %922 = vmatpush.bf16.msra.mxu0 0
        %923 = vmatpush.bf16.msra.mxu0 0
        %924 = vmatpush.bf16.msra.mxu0 0
        %925 = vmatpush.bf16.msra.mxu0 0
        %926 = vmatpush.bf16.msra.mxu0 0
        %927 = vmatpush.bf16.msra.mxu0 %v915
        %928 = vmatpush.bf16.msra.mxu0 %v914
        %929 = vmatmul.bf16.gmra.mxu0 %v919
        %v930 = vpop.f32.mrf.mxu0
        %v931 = vadd.f32 %v904, %v930
        %v932 = vpop.f32.mrf.mxu0
        %933 = vdwg.mxu0
        %v934 = vadd.f32 %v931, %v659
        %v935 = vld [vmem:[%s10] sm:$0x1]
        %v936 = vld [vmem:[#allocation9] sm:$0x1]
        %v937 = vsel %vm681, %v934, 0.0
        %938 = vadd.xlane.f32.xlu0 %v937
        %v939 = vpop.xlane.xlu0 %938
        %v940 = vrcp.pop 32.0
        %v941 = vmul.f32 32.0, %v940
        %v942 = vsub.f32 1.0, %v941
        %v943 = vmul.f32 %v940, %v942
        %v944 = vadd.f32 %v940, %v943
        %vm945 = vweird.f32 %v940
        %v946 = vsel %vm945, %v940, %v944
        %v947 = vmul.f32 %v939, %v946
        %v948 = vsub.f32 %v934, %v947
        %v949 = vmul.f32 %v948, %v948
        %v950 = vsel %vm681, %v949, 0.0
        %951 = vadd.xlane.f32.xlu0 %v950
        %v952 = vpop.xlane.xlu0 %951
        %v953 = vmul.f32 %v952, %v946
        %v954 = vadd.f32 %v953, 1e-12
        %v955 = vrsqrt.pop %v954
        %v956 = vmul.f32 %v955, %v954
        %v957 = vmul.f32 %v956, %v955
        %v958 = vmul.f32 0.5, %v957
        %v959 = vsub.f32 1.5, %v958
        %v960 = vmul.f32 %v955, %v959
        %v961 = vmul.f32 %v954, %v960
        %vm962 = vcmp.eq.f32.partialorder %v954, inf
        %v963 = vsel %vm962, %v954, %v961
        %vm964 = vcmp.eq.f32.partialorder %v954, 0.0
        %v965 = vand.u32 %v954, 2147483648
        %v966 = vsel %vm964, %v965, %v963
        %v967 = vrcp.pop %v966
        %v968 = vmul.f32 %v966, %v967
        %v969 = vsub.f32 1.0, %v968
        %v970 = vmul.f32 %v967, %v969
        %v971 = vadd.f32 %v967, %v970
        %vm972 = vweird.f32 %v966
        %vm973 = vweird.f32 %v967
        %vm974 = vmor %vm972, %vm973
        %v975 = vsel %vm974, %v967, %v971
        %v976 = vand.u32 2147483647, %v966
        %vm977 = vcmp.eq.f32.partialorder %v976, 8.507059e+37
        %v978 = vand.u32 %v966, 2147483648
        %v979 = vor.u32 1.1754944e-38, %v978
        %v980 = vsel %vm977, %v979, %v975
        %v981 = vmul.f32 %v948, %v980
        %v983 = vperm.slane %v935, 0
        %v985 = vmul.f32 %v983, %v981
        %v987 = vperm.slane %v936, 0
        %v989 = vadd.f32 %v985, %v987
        %v990 = vpack.c.bf16 %v989, %v989
        %v991 = vld [vmem:[%s12] sm:$0xf]
        %v992 = vld [vmem:[%s12 + $0x4] sm:$0xf]
        %v993 = vld [vmem:[%s12 + $0x8] sm:$0xf]
        %v994 = vld [vmem:[%s12 + $0xc] sm:$0xf]
        %v995 = vld [vmem:[%s13] sm:$0x1]
        %v997 = vperm.slane %v995, 0
        %v1003 = vunpack.c.l.b16 %v991
        %v1004 = vunpack.c.l.b16 %v992
        %v1005 = vunpack.c.l.b16 %v993
        %v1006 = vunpack.c.l.b16 %v994
        %v1007 = vpack.c.b16 %v1004, %v1003
        %v1008 = vpack.c.b16 %v1006, %v1005
        %v1012 = vsel %vm681, %v990, 0
        %1014 = vmatpush.bf16.msra.mxu0 0
        %1015 = vmatpush.bf16.msra.mxu0 0
        %1016 = vmatpush.bf16.msra.mxu0 0
        %1017 = vmatpush.bf16.msra.mxu0 0
        %1018 = vmatpush.bf16.msra.mxu0 0
        %1019 = vmatpush.bf16.msra.mxu0 0
        %1020 = vmatpush.bf16.msra.mxu0 %v1008
        %1021 = vmatpush.bf16.msra.mxu0 %v1007
        %1022 = vmatmul.bf16.gmra.mxu0 %v1012
        %v1023 = vpop.f32.mrf.mxu0
        %v1024 = vadd.f32 %v997, %v1023
        %v1025 = vpop.f32.mrf.mxu0
        %1026 = vdwg.mxu0
        %v1027 = vmax.f32 %v1024, 0.0
        %v1028 = vpack.c.bf16 %v1027, %v1027
        %v1029 = vld [vmem:[%s14] sm:$0xf]
        %v1030 = vld [vmem:[%s14 + $0x4] sm:$0xf]
        %v1031 = vld [vmem:[%s14 + $0x8] sm:$0xf]
        %v1032 = vld [vmem:[%s14 + $0xc] sm:$0xf]
        %v1033 = vld [vmem:[%s14 + $0x10] sm:$0xf]
        %v1034 = vld [vmem:[%s14 + $0x14] sm:$0xf]
        %v1035 = vld [vmem:[%s14 + $0x18] sm:$0xf]
        %v1036 = vld [vmem:[%s14 + $0x1c] sm:$0xf]
        %v1037 = vld [vmem:[%s14 + $0x20] sm:$0xf]
        %v1038 = vld [vmem:[%s14 + $0x24] sm:$0xf]
        %v1039 = vld [vmem:[%s14 + $0x28] sm:$0xf]
        %v1040 = vld [vmem:[%s14 + $0x2c] sm:$0xf]
        %v1041 = vld [vmem:[%s14 + $0x30] sm:$0xf]
        %v1042 = vld [vmem:[%s14 + $0x34] sm:$0xf]
        %v1043 = vld [vmem:[%s14 + $0x38] sm:$0xf]
        %v1044 = vld [vmem:[%s14 + $0x3c] sm:$0xf]
        %v1045 = vld [vmem:[%s15] sm:$0x1]
        %v1047 = vperm.slane %v1045, 0
        %v1065 = vunpack.c.l.b16 %v1029
        %v1066 = vunpack.c.l.b16 %v1030
        %v1067 = vunpack.c.l.b16 %v1031
        %v1068 = vunpack.c.l.b16 %v1032
        %v1069 = vunpack.c.l.b16 %v1033
        %v1070 = vunpack.c.l.b16 %v1034
        %v1071 = vunpack.c.l.b16 %v1035
        %v1072 = vunpack.c.l.b16 %v1036
        %v1073 = vunpack.c.l.b16 %v1037
        %v1074 = vunpack.c.l.b16 %v1038
        %v1075 = vunpack.c.l.b16 %v1039
        %v1076 = vunpack.c.l.b16 %v1040
        %v1077 = vunpack.c.l.b16 %v1041
        %v1078 = vunpack.c.l.b16 %v1042
        %v1079 = vunpack.c.l.b16 %v1043
        %v1080 = vunpack.c.l.b16 %v1044
        %v1081 = vpack.c.b16 %v1066, %v1065
        %v1082 = vpack.c.b16 %v1068, %v1067
        %v1083 = vpack.c.b16 %v1070, %v1069
        %v1084 = vpack.c.b16 %v1072, %v1071
        %v1085 = vpack.c.b16 %v1074, %v1073
        %v1086 = vpack.c.b16 %v1076, %v1075
        %v1087 = vpack.c.b16 %v1078, %v1077
        %v1088 = vpack.c.b16 %v1080, %v1079
        %1097 = vmatpush.bf16.msra.mxu0 %v1088
        %1098 = vmatpush.bf16.msra.mxu0 %v1087
        %1099 = vmatpush.bf16.msra.mxu0 %v1086
        %1100 = vmatpush.bf16.msra.mxu0 %v1085
        %1101 = vmatpush.bf16.msra.mxu0 %v1084
        %1102 = vmatpush.bf16.msra.mxu0 %v1083
        %1103 = vmatpush.bf16.msra.mxu0 %v1082
        %1104 = vmatpush.bf16.msra.mxu0 %v1081
        %1105 = vmatmul.bf16.gmra.mxu0 %v1028
        %v1106 = vpop.f32.mrf.mxu0
        %v1107 = vadd.f32 %v1047, %v1106
        %v1108 = vpop.f32.mrf.mxu0
        %1109 = vdwg.mxu0
        %v1110 = vadd.f32 %v1107, %v989
        %v1111 = vld [vmem:[%s16] sm:$0x1]
        %v1112 = vld [vmem:[#allocation11] sm:$0x1]
        %v1113 = vsel %vm681, %v1110, 0.0
        %1114 = vadd.xlane.f32.xlu0 %v1113
        %v1115 = vpop.xlane.xlu0 %1114
        %v1116 = vmul.f32 %v1115, %v946
        %v1117 = vsub.f32 %v1110, %v1116
        %v1118 = vmul.f32 %v1117, %v1117
        %v1119 = vsel %vm681, %v1118, 0.0
        %1120 = vadd.xlane.f32.xlu0 %v1119
        %v1121 = vpop.xlane.xlu0 %1120
        %v1122 = vmul.f32 %v1121, %v946
        %v1123 = vadd.f32 %v1122, 1e-12
        %v1124 = vrsqrt.pop %v1123
        %v1125 = vmul.f32 %v1124, %v1123
        %v1126 = vmul.f32 %v1125, %v1124
        %v1127 = vmul.f32 0.5, %v1126
        %v1128 = vsub.f32 1.5, %v1127
        %v1129 = vmul.f32 %v1124, %v1128
        %v1130 = vmul.f32 %v1123, %v1129
        %vm1131 = vcmp.eq.f32.partialorder %v1123, inf
        %v1132 = vsel %vm1131, %v1123, %v1130
        %vm1133 = vcmp.eq.f32.partialorder %v1123, 0.0
        %v1134 = vand.u32 %v1123, 2147483648
        %v1135 = vsel %vm1133, %v1134, %v1132
        %v1136 = vrcp.pop %v1135
        %v1137 = vmul.f32 %v1135, %v1136
        %v1138 = vsub.f32 1.0, %v1137
        %v1139 = vmul.f32 %v1136, %v1138
        %v1140 = vadd.f32 %v1136, %v1139
        %vm1141 = vweird.f32 %v1135
        %vm1142 = vweird.f32 %v1136
        %vm1143 = vmor %vm1141, %vm1142
        %v1144 = vsel %vm1143, %v1136, %v1140
        %v1145 = vand.u32 2147483647, %v1135
        %vm1146 = vcmp.eq.f32.partialorder %v1145, 8.507059e+37
        %v1147 = vand.u32 %v1135, 2147483648
        %v1148 = vor.u32 1.1754944e-38, %v1147
        %v1149 = vsel %vm1146, %v1148, %v1144
        %v1150 = vmul.f32 %v1117, %v1149
        %v1152 = vperm.slane %v1111, 0
        %v1154 = vmul.f32 %v1152, %v1150
        %v1156 = vperm.slane %v1112, 0
        %v1158 = vadd.f32 %v1154, %v1156
        %1159 = vst.msk [vmem:[%s656] sm:$0xff] %vm681, %v1158
        %v1160 = vpack.c.bf16 %v1158, %v1158
        %s1161 = scalar_lea.vmem %s2, 16
        %v1162 = vld [vmem:[%s1161] sm:$0xf]
        %v1163 = vld [vmem:[%s1161 + $0x4] sm:$0xf]
        %v1164 = vld [vmem:[%s1161 + $0x8] sm:$0xf]
        %v1165 = vld [vmem:[%s1161 + $0xc] sm:$0xf]
        %s1166 = scalar_lea.vmem [#allocation8], 1
        %v1167 = vld [vmem:[%s1166] sm:$0x1]
        %v1169 = vperm.slane %v1167, 0
        %v1175 = vunpack.c.l.b16 %v1162
        %v1176 = vunpack.c.l.b16 %v1163
        %v1177 = vunpack.c.l.b16 %v1164
        %v1178 = vunpack.c.l.b16 %v1165
        %v1179 = vpack.c.b16 %v1176, %v1175
        %v1180 = vpack.c.b16 %v1178, %v1177
        %v1184 = vsel %vm681, %v1160, 0
        %1186 = vmatpush.bf16.msra.mxu0 0
        %1187 = vmatpush.bf16.msra.mxu0 0
        %1188 = vmatpush.bf16.msra.mxu0 0
        %1189 = vmatpush.bf16.msra.mxu0 0
        %1190 = vmatpush.bf16.msra.mxu0 0
        %1191 = vmatpush.bf16.msra.mxu0 0
        %1192 = vmatpush.bf16.msra.mxu0 %v1180
        %1193 = vmatpush.bf16.msra.mxu0 %v1179
        %1194 = vmatmul.bf16.gmra.mxu0 %v1184
        %v1195 = vpop.f32.mrf.mxu0
        %v1196 = vadd.f32 %v1169, %v1195
        %v1197 = vpop.f32.mrf.mxu0
        %1198 = vdwg.mxu0
        %s1199 = scalar_lea.vmem %s4, 16
        %v1200 = vld [vmem:[%s1199] sm:$0xf]
        %v1201 = vld [vmem:[%s1199 + $0x4] sm:$0xf]
        %v1202 = vld [vmem:[%s1199 + $0x8] sm:$0xf]
        %v1203 = vld [vmem:[%s1199 + $0xc] sm:$0xf]
        %s1204 = scalar_lea.vmem %s5, 1
        %v1205 = vld [vmem:[%s1204] sm:$0x1]
        %v1207 = vperm.slane %v1205, 0
        %v1213 = vunpack.c.l.b16 %v1200
        %v1214 = vunpack.c.l.b16 %v1201
        %v1215 = vunpack.c.l.b16 %v1202
        %v1216 = vunpack.c.l.b16 %v1203
        %v1217 = vpack.c.b16 %v1214, %v1213
        %v1218 = vpack.c.b16 %v1216, %v1215
        %1221 = vmatpush.bf16.msra.mxu0 0
        %1222 = vmatpush.bf16.msra.mxu0 0
        %1223 = vmatpush.bf16.msra.mxu0 0
        %1224 = vmatpush.bf16.msra.mxu0 0
        %1225 = vmatpush.bf16.msra.mxu0 0
        %1226 = vmatpush.bf16.msra.mxu0 0
        %1227 = vmatpush.bf16.msra.mxu0 %v1218
        %1228 = vmatpush.bf16.msra.mxu0 %v1217
        %1229 = vmatmul.bf16.gmra.mxu0 %v1184
        %v1230 = vpop.f32.mrf.mxu0
        %v1231 = vadd.f32 %v1207, %v1230
        %v1232 = vpop.f32.mrf.mxu0
        %1233 = vdwg.mxu0
        %s1234 = scalar_lea.vmem %s6, 16
        %v1235 = vld [vmem:[%s1234] sm:$0xf]
        %v1236 = vld [vmem:[%s1234 + $0x4] sm:$0xf]
        %v1237 = vld [vmem:[%s1234 + $0x8] sm:$0xf]
        %v1238 = vld [vmem:[%s1234 + $0xc] sm:$0xf]
        %s1239 = scalar_lea.vmem %s7, 1
        %v1240 = vld [vmem:[%s1239] sm:$0x1]
        %v1242 = vperm.slane %v1240, 0
        %v1248 = vunpack.c.l.b16 %v1235
        %v1249 = vunpack.c.l.b16 %v1236
        %v1250 = vunpack.c.l.b16 %v1237
        %v1251 = vunpack.c.l.b16 %v1238
        %v1252 = vpack.c.b16 %v1249, %v1248
        %v1253 = vpack.c.b16 %v1251, %v1250
        %1256 = vmatpush.bf16.msra.mxu0 0
        %1257 = vmatpush.bf16.msra.mxu0 0
        %1258 = vmatpush.bf16.msra.mxu0 0
        %1259 = vmatpush.bf16.msra.mxu0 0
        %1260 = vmatpush.bf16.msra.mxu0 0
        %1261 = vmatpush.bf16.msra.mxu0 0
        %1262 = vmatpush.bf16.msra.mxu0 %v1253
        %1263 = vmatpush.bf16.msra.mxu0 %v1252
        %1264 = vmatmul.bf16.gmra.mxu0 %v1184
        %v1265 = vpop.f32.mrf.mxu0
        %v1266 = vadd.f32 %v1242, %v1265
        %v1267 = vpop.f32.mrf.mxu0
        %1268 = vdwg.mxu0
        %v1269 = vpack.c.bf16 %v1196, %v1196
        %v1270 = vpack.c.bf16 %v1231, %v1231
        %v1271 = vpack.c.bf16 %v1266, %v1266
        %v1273 = vsel %vm767, %v1269, 0
        %v1276 = vsel %vm767, %v1270, 0
        %1278 = vmatpush.bf16.xpose.msra.mxu0 0
        %1279 = vmatpush.bf16.xpose.msra.mxu0 0
        %1280 = vmatpush.bf16.xpose.msra.mxu0 0
        %1281 = vmatpush.bf16.xpose.msra.mxu0 0
        %1282 = vmatpush.bf16.xpose.msra.mxu0 0
        %1283 = vmatpush.bf16.xpose.msra.mxu0 0
        %1284 = vmatpush.bf16.xpose.msra.mxu0 0
        %1285 = vmatpush.bf16.xpose.msra.mxu0 %v1276
        %1286 = vmatmul.bf16.gmra.mxu0 %v1273
        %v1287 = vpop.f32.mrf.mxu0
        %v1288 = vadd.f32 0.0, %v1287
        %v1289 = vpop.f32.mrf.mxu0
        %1290 = vdwg.mxu0
        %v1291 = vmul.f32 %v1288, 0.25
        %v1292 = vadd.f32 %v1291, %v658
        %v1293 = vsel %vm789, %v1292, -inf
        %1294 = vmax.xlane.f32.xlu0 %v1293
        %v1295 = vpop.xlane.xlu0 %1294
        %v1296 = vsub.f32 %v1292, %v1295
        %v1297 = vmul.f32 %v1296, 1.442695
        %v1298 = vpow.pop %v1297
        %v1299 = vsel %vm789, %v1298, 0.0
        %1300 = vadd.xlane.f32.xlu0 %v1299
        %v1301 = vpop.xlane.xlu0 %1300
        %v1302 = vrcp.pop %v1301
        %v1303 = vmul.f32 %v1298, %v1302
        %v1304 = vpack.c.bf16 %v1303, %v1303
        %v1306 = vsel %vm789, %v1304, 0
        %v1309 = vsel %vm805, %v1271, 0
        %1311 = vmatpush.bf16.msra.mxu0 0
        %1312 = vmatpush.bf16.msra.mxu0 0
        %1313 = vmatpush.bf16.msra.mxu0 0
        %1314 = vmatpush.bf16.msra.mxu0 0
        %1315 = vmatpush.bf16.msra.mxu0 0
        %1316 = vmatpush.bf16.msra.mxu0 0
        %1317 = vmatpush.bf16.msra.mxu0 0
        %1318 = vmatpush.bf16.msra.mxu0 %v1309
        %1319 = vmatmul.bf16.gmra.mxu0 %v1306
        %v1320 = vpop.f32.mrf.mxu0
        %v1321 = vadd.f32 0.0, %v1320
        %v1322 = vpop.f32.mrf.mxu0
        %1323 = vdwg.mxu0
        %1324 = vst.msk [vmem:[#allocation2] sm:$0xff] %vm767, %v1321
        %v1326 = vunpack.c.l.b16 %v1269
        %v1327 = vpack.c.b16 %v1326, %v1326
        %1328 = vrot.lane.b32.xlu0 %v1327, 112
        %v1329 = vpop.permute.xlu0 %1328
        %v1331 = vunpack.c.l.b16 %v1270
        %v1332 = vpack.c.b16 %v1331, %v1331
        %1333 = vrot.lane.b32.xlu0 %v1332, 112
        %v1334 = vpop.permute.xlu0 %1333
        %v1336 = vsel %vm767, %v1329, 0
        %v1339 = vsel %vm767, %v1334, 0
        %1341 = vmatpush.bf16.xpose.msra.mxu0 0
        %1342 = vmatpush.bf16.xpose.msra.mxu0 0
        %1343 = vmatpush.bf16.xpose.msra.mxu0 0
        %1344 = vmatpush.bf16.xpose.msra.mxu0 0
        %1345 = vmatpush.bf16.xpose.msra.mxu0 0
        %1346 = vmatpush.bf16.xpose.msra.mxu0 0
        %1347 = vmatpush.bf16.xpose.msra.mxu0 0
        %1348 = vmatpush.bf16.xpose.msra.mxu0 %v1339
        %1349 = vmatmul.bf16.gmra.mxu0 %v1336
        %v1350 = vpop.f32.mrf.mxu0
        %v1351 = vadd.f32 0.0, %v1350
        %v1352 = vpop.f32.mrf.mxu0
        %1353 = vdwg.mxu0
        %v1354 = vmul.f32 %v1351, 0.25
        %v1355 = vadd.f32 %v1354, %v658
        %v1356 = vsel %vm789, %v1355, -inf
        %1357 = vmax.xlane.f32.xlu0 %v1356
        %v1358 = vpop.xlane.xlu0 %1357
        %v1359 = vsub.f32 %v1355, %v1358
        %v1360 = vmul.f32 %v1359, 1.442695
        %v1361 = vpow.pop %v1360
        %v1362 = vsel %vm789, %v1361, 0.0
        %1363 = vadd.xlane.f32.xlu0 %v1362
        %v1364 = vpop.xlane.xlu0 %1363
        %v1365 = vrcp.pop %v1364
        %v1366 = vmul.f32 %v1361, %v1365
        %v1367 = vpack.c.bf16 %v1366, %v1366
        %v1369 = vunpack.c.l.b16 %v1271
        %v1370 = vpack.c.b16 %v1369, %v1369
        %1371 = vrot.lane.b32.xlu0 %v1370, 112
        %v1372 = vpop.permute.xlu0 %1371
        %v1374 = vsel %vm789, %v1367, 0
        %v1377 = vsel %vm805, %v1372, 0
        %1379 = vmatpush.bf16.msra.mxu0 0
        %1380 = vmatpush.bf16.msra.mxu0 0
        %1381 = vmatpush.bf16.msra.mxu0 0
        %1382 = vmatpush.bf16.msra.mxu0 0
        %1383 = vmatpush.bf16.msra.mxu0 0
        %1384 = vmatpush.bf16.msra.mxu0 0
        %1385 = vmatpush.bf16.msra.mxu0 0
        %1386 = vmatpush.bf16.msra.mxu0 %v1377
        %1387 = vmatmul.bf16.gmra.mxu0 %v1374
        %v1388 = vpop.f32.mrf.mxu0
        %v1389 = vadd.f32 0.0, %v1388
        %v1390 = vpop.f32.mrf.mxu0
        %1391 = vdwg.mxu0
        %1393 = vrot.lane.b32.xlu0 %v1389, 16
        %v1394 = vpop.permute.xlu0 %1393
        %1396 = vst.msk [vmem:[#allocation2] sm:$0xff] %vm894, %v1394
        %v1397 = vld [vmem:[#allocation2] sm:$0xff]
        %v1398 = vpack.c.bf16 %v1397, %v1397
        %s1399 = scalar_lea.vmem %s8, 16
        %v1400 = vld [vmem:[%s1399] sm:$0xf]
        %v1401 = vld [vmem:[%s1399 + $0x4] sm:$0xf]
        %v1402 = vld [vmem:[%s1399 + $0x8] sm:$0xf]
        %v1403 = vld [vmem:[%s1399 + $0xc] sm:$0xf]
        %s1404 = scalar_lea.vmem %s9, 1
        %v1405 = vld [vmem:[%s1404] sm:$0x1]
        %v1407 = vperm.slane %v1405, 0
        %v1413 = vunpack.c.l.b16 %v1400
        %v1414 = vunpack.c.l.b16 %v1401
        %v1415 = vunpack.c.l.b16 %v1402
        %v1416 = vunpack.c.l.b16 %v1403
        %v1417 = vpack.c.b16 %v1414, %v1413
        %v1418 = vpack.c.b16 %v1416, %v1415
        %v1422 = vsel %vm681, %v1398, 0
        %1424 = vmatpush.bf16.msra.mxu0 0
        %1425 = vmatpush.bf16.msra.mxu0 0
        %1426 = vmatpush.bf16.msra.mxu0 0
        %1427 = vmatpush.bf16.msra.mxu0 0
        %1428 = vmatpush.bf16.msra.mxu0 0
        %1429 = vmatpush.bf16.msra.mxu0 0
        %1430 = vmatpush.bf16.msra.mxu0 %v1418
        %1431 = vmatpush.bf16.msra.mxu0 %v1417
        %1432 = vmatmul.bf16.gmra.mxu0 %v1422
        %v1433 = vpop.f32.mrf.mxu0
        %v1434 = vadd.f32 %v1407, %v1433
        %v1435 = vpop.f32.mrf.mxu0
        %1436 = vdwg.mxu0
        %v1437 = vadd.f32 %v1434, %v1158
        %s1438 = scalar_lea.vmem %s10, 1
        %v1439 = vld [vmem:[%s1438] sm:$0x1]
        %s1440 = scalar_lea.vmem [#allocation9], 1
        %v1441 = vld [vmem:[%s1440] sm:$0x1]
        %v1442 = vsel %vm681, %v1437, 0.0
        %1443 = vadd.xlane.f32.xlu0 %v1442
        %v1444 = vpop.xlane.xlu0 %1443
        %v1445 = vmul.f32 %v1444, %v946
        %v1446 = vsub.f32 %v1437, %v1445
        %v1447 = vmul.f32 %v1446, %v1446
        %v1448 = vsel %vm681, %v1447, 0.0
        %1449 = vadd.xlane.f32.xlu0 %v1448
        %v1450 = vpop.xlane.xlu0 %1449
        %v1451 = vmul.f32 %v1450, %v946
        %v1452 = vadd.f32 %v1451, 1e-12
        %v1453 = vrsqrt.pop %v1452
        %v1454 = vmul.f32 %v1453, %v1452
        %v1455 = vmul.f32 %v1454, %v1453
        %v1456 = vmul.f32 0.5, %v1455
        %v1457 = vsub.f32 1.5, %v1456
        %v1458 = vmul.f32 %v1453, %v1457
        %v1459 = vmul.f32 %v1452, %v1458
        %vm1460 = vcmp.eq.f32.partialorder %v1452, inf
        %v1461 = vsel %vm1460, %v1452, %v1459
        %vm1462 = vcmp.eq.f32.partialorder %v1452, 0.0
        %v1463 = vand.u32 %v1452, 2147483648
        %v1464 = vsel %vm1462, %v1463, %v1461
        %v1465 = vrcp.pop %v1464
        %v1466 = vmul.f32 %v1464, %v1465
        %v1467 = vsub.f32 1.0, %v1466
        %v1468 = vmul.f32 %v1465, %v1467
        %v1469 = vadd.f32 %v1465, %v1468
        %vm1470 = vweird.f32 %v1464
        %vm1471 = vweird.f32 %v1465
        %vm1472 = vmor %vm1470, %vm1471
        %v1473 = vsel %vm1472, %v1465, %v1469
        %v1474 = vand.u32 2147483647, %v1464
        %vm1475 = vcmp.eq.f32.partialorder %v1474, 8.507059e+37
        %v1476 = vand.u32 %v1464, 2147483648
        %v1477 = vor.u32 1.1754944e-38, %v1476
        %v1478 = vsel %vm1475, %v1477, %v1473
        %v1479 = vmul.f32 %v1446, %v1478
        %v1481 = vperm.slane %v1439, 0
        %v1483 = vmul.f32 %v1481, %v1479
        %v1485 = vperm.slane %v1441, 0
        %v1487 = vadd.f32 %v1483, %v1485
        %v1488 = vpack.c.bf16 %v1487, %v1487
        %s1489 = scalar_lea.vmem %s12, 16
        %v1490 = vld [vmem:[%s1489] sm:$0xf]
        %v1491 = vld [vmem:[%s1489 + $0x4] sm:$0xf]
        %v1492 = vld [vmem:[%s1489 + $0x8] sm:$0xf]
        %v1493 = vld [vmem:[%s1489 + $0xc] sm:$0xf]
        %s1494 = scalar_lea.vmem %s13, 1
        %v1495 = vld [vmem:[%s1494] sm:$0x1]
        %v1497 = vperm.slane %v1495, 0
        %v1503 = vunpack.c.l.b16 %v1490
        %v1504 = vunpack.c.l.b16 %v1491
        %v1505 = vunpack.c.l.b16 %v1492
        %v1506 = vunpack.c.l.b16 %v1493
        %v1507 = vpack.c.b16 %v1504, %v1503
        %v1508 = vpack.c.b16 %v1506, %v1505
        %v1512 = vsel %vm681, %v1488, 0
        %1514 = vmatpush.bf16.msra.mxu0 0
        %1515 = vmatpush.bf16.msra.mxu0 0
        %1516 = vmatpush.bf16.msra.mxu0 0
        %1517 = vmatpush.bf16.msra.mxu0 0
        %1518 = vmatpush.bf16.msra.mxu0 0
        %1519 = vmatpush.bf16.msra.mxu0 0
        %1520 = vmatpush.bf16.msra.mxu0 %v1508
        %1521 = vmatpush.bf16.msra.mxu0 %v1507
        %1522 = vmatmul.bf16.gmra.mxu0 %v1512
        %v1523 = vpop.f32.mrf.mxu0
        %v1524 = vadd.f32 %v1497, %v1523
        %v1525 = vpop.f32.mrf.mxu0
        %1526 = vdwg.mxu0
        %v1527 = vmax.f32 %v1524, 0.0
        %v1528 = vpack.c.bf16 %v1527, %v1527
        %s1529 = scalar_lea.vmem %s14, 64
        %v1530 = vld [vmem:[%s1529] sm:$0xf]
        %v1531 = vld [vmem:[%s1529 + $0x4] sm:$0xf]
        %v1532 = vld [vmem:[%s1529 + $0x8] sm:$0xf]
        %v1533 = vld [vmem:[%s1529 + $0xc] sm:$0xf]
        %v1534 = vld [vmem:[%s1529 + $0x10] sm:$0xf]
        %v1535 = vld [vmem:[%s1529 + $0x14] sm:$0xf]
        %v1536 = vld [vmem:[%s1529 + $0x18] sm:$0xf]
        %v1537 = vld [vmem:[%s1529 + $0x1c] sm:$0xf]
        %v1538 = vld [vmem:[%s1529 + $0x20] sm:$0xf]
        %v1539 = vld [vmem:[%s1529 + $0x24] sm:$0xf]
        %v1540 = vld [vmem:[%s1529 + $0x28] sm:$0xf]
        %v1541 = vld [vmem:[%s1529 + $0x2c] sm:$0xf]
        %v1542 = vld [vmem:[%s1529 + $0x30] sm:$0xf]
        %v1543 = vld [vmem:[%s1529 + $0x34] sm:$0xf]
        %v1544 = vld [vmem:[%s1529 + $0x38] sm:$0xf]
        %v1545 = vld [vmem:[%s1529 + $0x3c] sm:$0xf]
        %s1546 = scalar_lea.vmem %s15, 1
        %v1547 = vld [vmem:[%s1546] sm:$0x1]
        %v1549 = vperm.slane %v1547, 0
        %v1567 = vunpack.c.l.b16 %v1530
        %v1568 = vunpack.c.l.b16 %v1531
        %v1569 = vunpack.c.l.b16 %v1532
        %v1570 = vunpack.c.l.b16 %v1533
        %v1571 = vunpack.c.l.b16 %v1534
        %v1572 = vunpack.c.l.b16 %v1535
        %v1573 = vunpack.c.l.b16 %v1536
        %v1574 = vunpack.c.l.b16 %v1537
        %v1575 = vunpack.c.l.b16 %v1538
        %v1576 = vunpack.c.l.b16 %v1539
        %v1577 = vunpack.c.l.b16 %v1540
        %v1578 = vunpack.c.l.b16 %v1541
        %v1579 = vunpack.c.l.b16 %v1542
        %v1580 = vunpack.c.l.b16 %v1543
        %v1581 = vunpack.c.l.b16 %v1544
        %v1582 = vunpack.c.l.b16 %v1545
        %v1583 = vpack.c.b16 %v1568, %v1567
        %v1584 = vpack.c.b16 %v1570, %v1569
        %v1585 = vpack.c.b16 %v1572, %v1571
        %v1586 = vpack.c.b16 %v1574, %v1573
        %v1587 = vpack.c.b16 %v1576, %v1575
        %v1588 = vpack.c.b16 %v1578, %v1577
        %v1589 = vpack.c.b16 %v1580, %v1579
        %v1590 = vpack.c.b16 %v1582, %v1581
        %1599 = vmatpush.bf16.msra.mxu0 %v1590
        %1600 = vmatpush.bf16.msra.mxu0 %v1589
        %1601 = vmatpush.bf16.msra.mxu0 %v1588
        %1602 = vmatpush.bf16.msra.mxu0 %v1587
        %1603 = vmatpush.bf16.msra.mxu0 %v1586
        %1604 = vmatpush.bf16.msra.mxu0 %v1585
        %1605 = vmatpush.bf16.msra.mxu0 %v1584
        %1606 = vmatpush.bf16.msra.mxu0 %v1583
        %1607 = vmatmul.bf16.gmra.mxu0 %v1528
        %v1608 = vpop.f32.mrf.mxu0
        %v1609 = vadd.f32 %v1549, %v1608
        %v1610 = vpop.f32.mrf.mxu0
        %1611 = vdwg.mxu0
        %v1612 = vadd.f32 %v1609, %v1487
        %s1613 = scalar_lea.vmem %s16, 1
        %v1614 = vld [vmem:[%s1613] sm:$0x1]
        %s1615 = scalar_lea.vmem [#allocation11], 1
        %v1616 = vld [vmem:[%s1615] sm:$0x1]
        %v1617 = vsel %vm681, %v1612, 0.0
        %1618 = vadd.xlane.f32.xlu0 %v1617
        %v1619 = vpop.xlane.xlu0 %1618
        %v1620 = vmul.f32 %v1619, %v946
        %v1621 = vsub.f32 %v1612, %v1620
        %v1622 = vmul.f32 %v1621, %v1621
        %v1623 = vsel %vm681, %v1622, 0.0
        %1624 = vadd.xlane.f32.xlu0 %v1623
        %v1625 = vpop.xlane.xlu0 %1624
        %v1626 = vmul.f32 %v1625, %v946
        %v1627 = vadd.f32 %v1626, 1e-12
        %v1628 = vrsqrt.pop %v1627
        %v1629 = vmul.f32 %v1628, %v1627
        %v1630 = vmul.f32 %v1629, %v1628
        %v1631 = vmul.f32 0.5, %v1630
        %v1632 = vsub.f32 1.5, %v1631
        %v1633 = vmul.f32 %v1628, %v1632
        %v1634 = vmul.f32 %v1627, %v1633
        %vm1635 = vcmp.eq.f32.partialorder %v1627, inf
        %v1636 = vsel %vm1635, %v1627, %v1634
        %vm1637 = vcmp.eq.f32.partialorder %v1627, 0.0
        %v1638 = vand.u32 %v1627, 2147483648
        %v1639 = vsel %vm1637, %v1638, %v1636
        %v1640 = vrcp.pop %v1639
        %v1641 = vmul.f32 %v1639, %v1640
        %v1642 = vsub.f32 1.0, %v1641
        %v1643 = vmul.f32 %v1640, %v1642
        %v1644 = vadd.f32 %v1640, %v1643
        %vm1645 = vweird.f32 %v1639
        %vm1646 = vweird.f32 %v1640
        %vm1647 = vmor %vm1645, %vm1646
        %v1648 = vsel %vm1647, %v1640, %v1644
        %v1649 = vand.u32 2147483647, %v1639
        %vm1650 = vcmp.eq.f32.partialorder %v1649, 8.507059e+37
        %v1651 = vand.u32 %v1639, 2147483648
        %v1652 = vor.u32 1.1754944e-38, %v1651
        %v1653 = vsel %vm1650, %v1652, %v1648
        %v1654 = vmul.f32 %v1621, %v1653
        %v1656 = vperm.slane %v1614, 0
        %v1658 = vmul.f32 %v1656, %v1654
        %v1660 = vperm.slane %v1616, 0
        %v1662 = vadd.f32 %v1658, %v1660
        %s1663 = scalar_lea.vmem %s656, 8 [#allocation12]
        %1664 = vst.msk [vmem:[%s1663] sm:$0xff] %vm681, %v1662
        %s1665 = sand.u32 %s428, 1
        %s1666 = scalar_lea.sflag [#allocation5], %s1665
        %s1667 = sand.u32 %s428, 1
        %s1668 = smul.addr %s1667, 16
        %s1669 = scalar_lea.vmem [#allocation12], %s1668
        // Predicated region
        $region113: #{tpu_custom_call.1} parent=91 // pred_check
          %p1670 = pneg %p438
        $region114: #{tpu_custom_call.1} parent=91 // pred_check_branch
          %1672 = sbr.rel (%p1670) target = $region116
        $region115: #{tpu_custom_call.1} parent=91 // pred_region
          %1674 = vsyncadd %s1666, 0
          %s1675 = smul.addr %s37, 8
          %s1676 = scalar_lea.hbm %s18, %s1675
          %s1677 = sshll.u32 %s1669, 4
          %s1678 = int_to_ptr.vmem [resolvable:$true] %s1677
          %s1679 = sshll.u32 %s1676, 4
          %s1680 = int_to_ptr.hbm [resolvable:$true] %s1679
          %1685 = dma.vmem_to_hbm [thread:$0]  %s1678, 256, %s1680, %s1666, 128, 256, 8
        $region116: #{tpu_custom_call.1} parent=91 // pred_fallthru
          _
      $region92: #{tpu_custom_call.1} parent=5 // pred_fallthru
        _
      %p1686 = scmp.le.s32.totalorder 2, %s32
      // Predicated region
      $region117: #{tpu_custom_call.1} parent=5 // pred_check
        %p1687 = pneg %p1686
      $region118: #{tpu_custom_call.1} parent=5 // pred_check_branch
        %1689 = sbr.rel (%p1687) target = $region120
      $region119: #{tpu_custom_call.1} parent=5 // pred_region
        %s1690 = ssub.s32 %s32, 2
        // Predicated region
        $region121: #{tpu_custom_call.1} parent=119 // pred_check
          %p1691 = pneg %p444
        $region122: #{tpu_custom_call.1} parent=119 // pred_check_branch
          %1693 = sbr.rel (%p1691) target = $region124
        $region123: #{tpu_custom_call.1} parent=119 // pred_region
          %s1694 = sand.u32 %s429, 1
          %s1695 = scalar_lea.sflag [#allocation5], %s1694
          %s1696 = sand.u32 %s429, 1
          %s1697 = smul.addr %s1696, 16
          %s1698 = scalar_lea.vmem [#allocation12], %s1697
          %1700 = dma.done %s1695, 256
        $region124: #{tpu_custom_call.1} parent=119 // pred_fallthru
          _
      $region120: #{tpu_custom_call.1} parent=5 // pred_fallthru
        _
    $region6: #{tpu_custom_call.1} parent=1 // loop_footer
      %s36 = sadd.s32 1, %s32
    $region7: #{tpu_custom_call.1} parent=1 // loop_footer_branch
      %31 = sbr.rel target = $region3
    $region8: #{tpu_custom_call.1} parent=1 // loop_exit
      _
    %1701 = vsyncpa [#allocation4], 1
    %s1702 = scalar_lea.sflag [#allocation4], 1
    %1703 = vsyncpa %s1702, 1
    %1704 = vsyncpa [#allocation7], 1
    %1705 = vsyncpa [#allocation10], 1
    %1706 = vsyncpa [#allocation5], 1
    %s1707 = scalar_lea.sflag [#allocation5], 1
    %1708 = vsyncpa %s1707, 1

</llo_original>
